<compile_context>
chip_gen: v7x
topology: tpu7x:2x2x1
jax: 0.10.0
libtpu: 0.0.40
codegen_flags: <defaults>
</compile_context>

<pallas_src>
import jax
import jax.numpy as jnp
import numpy as np
from jax import lax
from jax.experimental import pallas as pl
from jax.experimental.pallas import tpu as pltpu


# ---------------- static model constants ----------------
CIN = 3                 # conv1 input channels
C1_FULL, C1 = 13, 12    # conv1 declared outputs / outputs actually consumed
GROUPS, CIN_G, COUT_G, COUT = 2, 6, 5, 10
KH = KW = 3
LANES = 128             # lane-dense padding width
K1 = KH * KW * CIN      # 27
K1P = 32                # conv1 contraction padded to a sublane multiple
NTAPS = KH * KW         # 9


# ---------------- the single fused Pallas kernel ----------------

def _fused_forward_kernel(p1_ref, w1_ref, b1_ref, s_ref, w2_ref, b2_ref, o_ref):
    # conv1 as one lane-dense matmul: (M1, 32) @ (32, 128) + bias, fused tanh.
    v1 = jnp.dot(p1_ref[...], w1_ref[...], preferred_element_type=jnp.float32)
    v2 = jnp.tanh(v1 + b1_ref[...])                      # (M1, 128); lanes >= 12 are 0

    # conv2 (grouped, stride 2, pad 1) as a sum over the 9 taps:
    #   S_t @ v2      -> stride-2/pad-1 spatial gather of conv1 rows (0/1 matrix)
    #   tap @ W2_t    -> block-diagonal grouped channel mix, lane-padded to 128
    acc = jnp.zeros(o_ref.shape, jnp.float32)
    for t in range(NTAPS):                               # static, fully unrolled
        tap = jnp.dot(s_ref[t], v2, preferred_element_type=jnp.float32)      # (M2,128)
        acc = acc + jnp.dot(tap, w2_ref[t], preferred_element_type=jnp.float32)
    o_ref[...] = acc + b2_ref[...]


def fused_forward_pallas(p1, w1p, b1p, selectors, w2p, b2p):
    m1, k1 = p1.shape
    m2 = selectors.shape[1]
    return pl.pallas_call(
        _fused_forward_kernel,
        out_shape=jax.ShapeDtypeStruct((m2, LANES), jnp.float32),
        grid=(1,),
        in_specs=[
            pl.BlockSpec((m1, k1), lambda i: (0, 0)),
            pl.BlockSpec((k1, LANES), lambda i: (0, 0)),
            pl.BlockSpec((1, LANES), lambda i: (0, 0)),
            pl.BlockSpec((NTAPS, m2, m1), lambda i: (0, 0, 0)),
            pl.BlockSpec((NTAPS, LANES, LANES), lambda i: (0, 0, 0)),
            pl.BlockSpec((1, LANES), lambda i: (0, 0)),
        ],
        out_specs=pl.BlockSpec((m2, LANES), lambda i: (0, 0)),
        compiler_params=pltpu.CompilerParams(dimension_semantics=("arbitrary",)),
    )(p1, w1p, b1p, selectors, w2p, b2p)


# ---------------- host-side packing (done once) ----------------

def pack_params(params):
    w1 = np.asarray(params["w1"])      # (3, 3, 3, 13)  HWIO
    b1 = np.asarray(params["b1"])      # (13,)
    w2g = np.asarray(params["w2g"])    # (2, 3, 3, 6, 5)  (G, KH, KW, Cin_g, Cout_g)
    b2 = np.asarray(params["b2"])      # (10,)

    # conv1 weight: (K=27 -> 32 padded, Cout=12 -> 128 padded); drop dead channel 13.
    w1p = np.zeros((K1P, LANES), np.float32)
    w1p[:K1, :C1] = w1.reshape(K1, C1_FULL)[:, :C1]
    b1p = np.zeros((1, LANES), np.float32)
    b1p[0, :C1] = b1[:C1]

    # conv2: one 128x128 block-diagonal slab per tap (groups laid out on the diagonal).
    w2p = np.zeros((NTAPS, LANES, LANES), np.float32)
    for i in range(KH):
        for j in range(KW):
            t = i * KW + j
            for g in range(GROUPS):
                w2p[t, g * CIN_G:(g + 1) * CIN_G,
                       g * COUT_G:(g + 1) * COUT_G] = w2g[g, i, j]
    b2p = np.zeros((1, LANES), np.float32)
    b2p[0, :COUT] = b2

    return {k: jnp.asarray(v) for k, v in
            dict(w1p=w1p, b1p=b1p, w2p=w2p, b2p=b2p).items()}


def build_tap_selectors(n, oh1, ow1, oh2, ow2):
    """0/1 matrices S[t] of shape (M2, M1): row gather for conv2 tap t (zero rows = pad)."""
    m1, m2 = n * oh1 * ow1, n * oh2 * ow2
    sel = np.zeros((NTAPS, m2, m1), np.float32)
    for i in range(KH):
        for j in range(KW):
            t = i * KW + j
            for b in range(n):
                for oh in range(oh2):
                    for ow in range(ow2):
                        h = 2 * oh + i - 1
                        w = 2 * ow + j - 1
                        if 0 <= h < oh1 and 0 <= w < ow1:
                            sel[t, (b * oh2 + oh) * ow2 + ow,
                                   (b * oh1 + h) * ow1 + w] = 1.0
    return jnp.asarray(sel)


# ---------------- wrapper glue (layout plumbing only) ----------------

def _conv_out(size, k=3, s=2, p=1):
    return (size + 2 * p - k) // s + 1


def _im2col(x_nhwc, kh, kw, stride, pad):
    n, h, w, c = x_nhwc.shape
    xp = jnp.pad(x_nhwc, ((0, 0), (pad, pad), (pad, pad), (0, 0)))
    oh = (h + 2 * pad - kh) // stride + 1
    ow = (w + 2 * pad - kw) // stride + 1
    cols = []
    for i in range(kh):
        for j in range(kw):
            cols.append(xp[:, i:i + stride * oh:stride, j:j + stride * ow:stride, :])
    patches = jnp.concatenate(cols, axis=-1)             # (N, OH, OW, KH*KW*C)
    return patches.reshape(n * oh * ow, kh * kw * c), oh, ow


def model_tanh_forward(x_nchw, packed, selectors):
    n = x_nchw.shape[0]
    x = jnp.transpose(x_nchw, (0, 2, 3, 1))              # NCHW -> NHWC

    # conv1 im2col (input-side layout plumbing); pad K 27 -> 32.
    p1, oh1, ow1 = _im2col(x, KH, KW, 2, 1)
    p1 = jnp.pad(p1, ((0, 0), (0, K1P - K1)))            # (N*OH1*OW1, 32)
    oh2, ow2 = _conv_out(oh1), _conv_out(ow1)

    # ONE fused kernel: conv1 + bias + tanh + grouped conv2 + bias.
    out_slab = fused_forward_pallas(p1, packed["w1p"], packed["b1p"],
                                    selectors, packed["w2p"], packed["b2p"])

    # Lane-dense slab -> NCHW (wrapper-side reshape/transpose, tiny).
    out = out_slab[:, :COUT].reshape(n, oh2, ow2, COUT)
    return jnp.transpose(out, (0, 3, 1, 2))


# ---------------- pure-JAX reference (lax.conv) for correctness check ----------------

def reference_forward(x, params):
    w1 = jnp.transpose(params["w1"], (3, 2, 0, 1))       # HWIO -> OIHW
    v1 = lax.conv_general_dilated(x, w1, (2, 2), ((1, 1), (1, 1)),
                                  dimension_numbers=("NCHW", "OIHW", "NCHW"),
                                  precision=lax.Precision.HIGHEST)
    v1 = v1 + params["b1"].reshape(1, -1, 1, 1)
    v2 = jnp.tanh(v1)[:, :C1]
    w2 = jnp.transpose(params["w2g"], (0, 4, 3, 1, 2)).reshape(COUT, CIN_G, KH, KW)
    v3 = lax.conv_general_dilated(v2, w2, (2, 2), ((1, 1), (1, 1)),
                                  dimension_numbers=("NCHW", "OIHW", "NCHW"),
                                  feature_group_count=GROUPS,
                                  precision=lax.Precision.HIGHEST)
    return v3 + params["b2"].reshape(1, -1, 1, 1)


if __name__ == "__main__":
    key = jax.random.PRNGKey(0)
    k1, k2, k3, k4, kx = jax.random.split(key, 5)
    params = {
        # conv1 weight: torch shape (13, 3, 3, 3) kept here as HWIO (3, 3, 3, 13)
        "w1": 0.1 * jax.random.normal(k1, (3, 3, 3, 13), jnp.float32),
        "b1": 0.1 * jax.random.normal(k2, (13,), jnp.float32),
        # conv2 grouped weight: (G=2, KH=3, KW=3, Cin_g=6, Cout_g=5)
        "w2g": 0.1 * jax.random.normal(k3, (2, 3, 3, 6, 5), jnp.float32),
        "b2": 0.1 * jax.random.normal(k4, (10,), jnp.float32),
    }
    x = jax.random.normal(kx, (2, 3, 16, 16), jnp.float32)   # small NCHW input

    n, _, h, w = x.shape
    oh1, ow1 = _conv_out(h), _conv_out(w)                # 8, 8
    oh2, ow2 = _conv_out(oh1), _conv_out(ow1)            # 4, 4

    packed = pack_params(params)
    selectors = build_tap_selectors(n, oh1, ow1, oh2, ow2)

    fwd = jax.jit(model_tanh_forward)
    out = jax.block_until_ready(fwd(x, packed, selectors))
    assert out.shape == (n, COUT, oh2, ow2), out.shape

    ref = reference_forward(x, params)
    np.testing.assert_allclose(np.asarray(out), np.asarray(ref), rtol=1e-4, atol=1e-4)
    print("KERNEL_OK")
</pallas_src>

<mosaic_0001>
module attributes {stable_mosaic.version = 11 : i64} {
  func.func @_fused_forward_kernel(%arg0: i32, %arg1: memref<128x32xf32, #tpu.memory_space<vmem>>, %arg2: memref<32x128xf32, #tpu.memory_space<vmem>>, %arg3: memref<1x128xf32, #tpu.memory_space<vmem>>, %arg4: memref<9x32x128xf32, #tpu.memory_space<vmem>>, %arg5: memref<9x128x128xf32, #tpu.memory_space<vmem>>, %arg6: memref<1x128xf32, #tpu.memory_space<vmem>>, %arg7: memref<32x128xf32, #tpu.memory_space<vmem>>) attributes {dimension_semantics = [#tpu.dimension_semantics<arbitrary>], iteration_bounds = array<i64: 1>, scalar_prefetch = 0 : i64, scratch_operands = 0 : i64, tpu.core_type = #tpu.core_type<tc>, window_params = [{pipeline_mode = #tpu.pipeline_mode<synchronous>, transform_indices = @transform_0, window_bounds = array<i64: 128, 32>}, {pipeline_mode = #tpu.pipeline_mode<synchronous>, transform_indices = @transform_1, window_bounds = array<i64: 32, 128>}, {pipeline_mode = #tpu.pipeline_mode<synchronous>, transform_indices = @transform_2, window_bounds = array<i64: 1, 128>}, {pipeline_mode = #tpu.pipeline_mode<synchronous>, transform_indices = @transform_3, window_bounds = array<i64: 9, 32, 128>}, {pipeline_mode = #tpu.pipeline_mode<synchronous>, transform_indices = @transform_4, window_bounds = array<i64: 9, 128, 128>}, {pipeline_mode = #tpu.pipeline_mode<synchronous>, transform_indices = @transform_5, window_bounds = array<i64: 1, 128>}, {pipeline_mode = #tpu.pipeline_mode<synchronous>, transform_indices = @transform_6, window_bounds = array<i64: 32, 128>}]} {
    %c0 = arith.constant 0 : index
    %c0_0 = arith.constant 0 : index
    %0 = vector.load %arg1[%c0, %c0_0] : memref<128x32xf32, #tpu.memory_space<vmem>>, vector<128x32xf32>
    %c0_1 = arith.constant 0 : index
    %c0_2 = arith.constant 0 : index
    %1 = vector.load %arg2[%c0_1, %c0_2] : memref<32x128xf32, #tpu.memory_space<vmem>>, vector<32x128xf32>
    %cst = arith.constant dense<0.000000e+00> : vector<128x128xf32>
    %2 = tpu.matmul %0, %1, %cst {dimension_numbers = #tpu.dot_dimension_numbers<[1], [0], [0], [1], [0, 0, 1, 1], [], []>} : vector<128x32xf32>, vector<32x128xf32>, vector<128x128xf32> -> vector<128x128xf32>
    %c0_3 = arith.constant 0 : index
    %c0_4 = arith.constant 0 : index
    %3 = vector.load %arg3[%c0_3, %c0_4] : memref<1x128xf32, #tpu.memory_space<vmem>>, vector<1x128xf32>
    %4 = vector.broadcast %3 : vector<1x128xf32> to vector<128x128xf32>
    %5 = arith.addf %2, %4 : vector<128x128xf32>
    %6 = math.tanh %5 : vector<128x128xf32>
    %cst_5 = arith.constant 0.000000e+00 : f32
    %7 = vector.broadcast %cst_5 : f32 to vector<32x128xf32>
    %c0_6 = arith.constant 0 : index
    %c0_7 = arith.constant 0 : index
    %c0_8 = arith.constant 0 : index
    %8 = vector.load %arg4[%c0_6, %c0_7, %c0_8] : memref<9x32x128xf32, #tpu.memory_space<vmem>>, vector<1x32x128xf32>
    %9 = vector.shape_cast %8 : vector<1x32x128xf32> to vector<32x128xf32>
    %cst_9 = arith.constant dense<0.000000e+00> : vector<32x128xf32>
    %10 = tpu.matmul %9, %6, %cst_9 {dimension_numbers = #tpu.dot_dimension_numbers<[1], [0], [0], [1], [0, 0, 1, 1], [], []>} : vector<32x128xf32>, vector<128x128xf32>, vector<32x128xf32> -> vector<32x128xf32>
    %c0_10 = arith.constant 0 : index
    %c0_11 = arith.constant 0 : index
    %c0_12 = arith.constant 0 : index
    %11 = vector.load %arg5[%c0_10, %c0_11, %c0_12] : memref<9x128x128xf32, #tpu.memory_space<vmem>>, vector<1x128x128xf32>
    %12 = vector.shape_cast %11 : vector<1x128x128xf32> to vector<128x128xf32>
    %cst_13 = arith.constant dense<0.000000e+00> : vector<32x128xf32>
    %13 = tpu.matmul %10, %12, %cst_13 {dimension_numbers = #tpu.dot_dimension_numbers<[1], [0], [0], [1], [0, 0, 1, 1], [], []>} : vector<32x128xf32>, vector<128x128xf32>, vector<32x128xf32> -> vector<32x128xf32>
    %14 = arith.addf %7, %13 : vector<32x128xf32>
    %c1 = arith.constant 1 : index
    %c0_14 = arith.constant 0 : index
    %c0_15 = arith.constant 0 : index
    %15 = vector.load %arg4[%c1, %c0_14, %c0_15] : memref<9x32x128xf32, #tpu.memory_space<vmem>>, vector<1x32x128xf32>
    %16 = vector.shape_cast %15 : vector<1x32x128xf32> to vector<32x128xf32>
    %cst_16 = arith.constant dense<0.000000e+00> : vector<32x128xf32>
    %17 = tpu.matmul %16, %6, %cst_16 {dimension_numbers = #tpu.dot_dimension_numbers<[1], [0], [0], [1], [0, 0, 1, 1], [], []>} : vector<32x128xf32>, vector<128x128xf32>, vector<32x128xf32> -> vector<32x128xf32>
    %c1_17 = arith.constant 1 : index
    %c0_18 = arith.constant 0 : index
    %c0_19 = arith.constant 0 : index
    %18 = vector.load %arg5[%c1_17, %c0_18, %c0_19] : memref<9x128x128xf32, #tpu.memory_space<vmem>>, vector<1x128x128xf32>
    %19 = vector.shape_cast %18 : vector<1x128x128xf32> to vector<128x128xf32>
    %cst_20 = arith.constant dense<0.000000e+00> : vector<32x128xf32>
    %20 = tpu.matmul %17, %19, %cst_20 {dimension_numbers = #tpu.dot_dimension_numbers<[1], [0], [0], [1], [0, 0, 1, 1], [], []>} : vector<32x128xf32>, vector<128x128xf32>, vector<32x128xf32> -> vector<32x128xf32>
    %21 = arith.addf %14, %20 : vector<32x128xf32>
    %c2 = arith.constant 2 : index
    %c0_21 = arith.constant 0 : index
    %c0_22 = arith.constant 0 : index
    %22 = vector.load %arg4[%c2, %c0_21, %c0_22] : memref<9x32x128xf32, #tpu.memory_space<vmem>>, vector<1x32x128xf32>
    %23 = vector.shape_cast %22 : vector<1x32x128xf32> to vector<32x128xf32>
    %cst_23 = arith.constant dense<0.000000e+00> : vector<32x128xf32>
    %24 = tpu.matmul %23, %6, %cst_23 {dimension_numbers = #tpu.dot_dimension_numbers<[1], [0], [0], [1], [0, 0, 1, 1], [], []>} : vector<32x128xf32>, vector<128x128xf32>, vector<32x128xf32> -> vector<32x128xf32>
    %c2_24 = arith.constant 2 : index
    %c0_25 = arith.constant 0 : index
    %c0_26 = arith.constant 0 : index
    %25 = vector.load %arg5[%c2_24, %c0_25, %c0_26] : memref<9x128x128xf32, #tpu.memory_space<vmem>>, vector<1x128x128xf32>
    %26 = vector.shape_cast %25 : vector<1x128x128xf32> to vector<128x128xf32>
    %cst_27 = arith.constant dense<0.000000e+00> : vector<32x128xf32>
    %27 = tpu.matmul %24, %26, %cst_27 {dimension_numbers = #tpu.dot_dimension_numbers<[1], [0], [0], [1], [0, 0, 1, 1], [], []>} : vector<32x128xf32>, vector<128x128xf32>, vector<32x128xf32> -> vector<32x128xf32>
    %28 = arith.addf %21, %27 : vector<32x128xf32>
    %c3 = arith.constant 3 : index
    %c0_28 = arith.constant 0 : index
    %c0_29 = arith.constant 0 : index
    %29 = vector.load %arg4[%c3, %c0_28, %c0_29] : memref<9x32x128xf32, #tpu.memory_space<vmem>>, vector<1x32x128xf32>
    %30 = vector.shape_cast %29 : vector<1x32x128xf32> to vector<32x128xf32>
    %cst_30 = arith.constant dense<0.000000e+00> : vector<32x128xf32>
    %31 = tpu.matmul %30, %6, %cst_30 {dimension_numbers = #tpu.dot_dimension_numbers<[1], [0], [0], [1], [0, 0, 1, 1], [], []>} : vector<32x128xf32>, vector<128x128xf32>, vector<32x128xf32> -> vector<32x128xf32>
    %c3_31 = arith.constant 3 : index
    %c0_32 = arith.constant 0 : index
    %c0_33 = arith.constant 0 : index
    %32 = vector.load %arg5[%c3_31, %c0_32, %c0_33] : memref<9x128x128xf32, #tpu.memory_space<vmem>>, vector<1x128x128xf32>
    %33 = vector.shape_cast %32 : vector<1x128x128xf32> to vector<128x128xf32>
    %cst_34 = arith.constant dense<0.000000e+00> : vector<32x128xf32>
    %34 = tpu.matmul %31, %33, %cst_34 {dimension_numbers = #tpu.dot_dimension_numbers<[1], [0], [0], [1], [0, 0, 1, 1], [], []>} : vector<32x128xf32>, vector<128x128xf32>, vector<32x128xf32> -> vector<32x128xf32>
    %35 = arith.addf %28, %34 : vector<32x128xf32>
    %c4 = arith.constant 4 : index
    %c0_35 = arith.constant 0 : index
    %c0_36 = arith.constant 0 : index
    %36 = vector.load %arg4[%c4, %c0_35, %c0_36] : memref<9x32x128xf32, #tpu.memory_space<vmem>>, vector<1x32x128xf32>
    %37 = vector.shape_cast %36 : vector<1x32x128xf32> to vector<32x128xf32>
    %cst_37 = arith.constant dense<0.000000e+00> : vector<32x128xf32>
    %38 = tpu.matmul %37, %6, %cst_37 {dimension_numbers = #tpu.dot_dimension_numbers<[1], [0], [0], [1], [0, 0, 1, 1], [], []>} : vector<32x128xf32>, vector<128x128xf32>, vector<32x128xf32> -> vector<32x128xf32>
    %c4_38 = arith.constant 4 : index
    %c0_39 = arith.constant 0 : index
    %c0_40 = arith.constant 0 : index
    %39 = vector.load %arg5[%c4_38, %c0_39, %c0_40] : memref<9x128x128xf32, #tpu.memory_space<vmem>>, vector<1x128x128xf32>
    %40 = vector.shape_cast %39 : vector<1x128x128xf32> to vector<128x128xf32>
    %cst_41 = arith.constant dense<0.000000e+00> : vector<32x128xf32>
    %41 = tpu.matmul %38, %40, %cst_41 {dimension_numbers = #tpu.dot_dimension_numbers<[1], [0], [0], [1], [0, 0, 1, 1], [], []>} : vector<32x128xf32>, vector<128x128xf32>, vector<32x128xf32> -> vector<32x128xf32>
    %42 = arith.addf %35, %41 : vector<32x128xf32>
    %c5 = arith.constant 5 : index
    %c0_42 = arith.constant 0 : index
    %c0_43 = arith.constant 0 : index
    %43 = vector.load %arg4[%c5, %c0_42, %c0_43] : memref<9x32x128xf32, #tpu.memory_space<vmem>>, vector<1x32x128xf32>
    %44 = vector.shape_cast %43 : vector<1x32x128xf32> to vector<32x128xf32>
    %cst_44 = arith.constant dense<0.000000e+00> : vector<32x128xf32>
    %45 = tpu.matmul %44, %6, %cst_44 {dimension_numbers = #tpu.dot_dimension_numbers<[1], [0], [0], [1], [0, 0, 1, 1], [], []>} : vector<32x128xf32>, vector<128x128xf32>, vector<32x128xf32> -> vector<32x128xf32>
    %c5_45 = arith.constant 5 : index
    %c0_46 = arith.constant 0 : index
    %c0_47 = arith.constant 0 : index
    %46 = vector.load %arg5[%c5_45, %c0_46, %c0_47] : memref<9x128x128xf32, #tpu.memory_space<vmem>>, vector<1x128x128xf32>
    %47 = vector.shape_cast %46 : vector<1x128x128xf32> to vector<128x128xf32>
    %cst_48 = arith.constant dense<0.000000e+00> : vector<32x128xf32>
    %48 = tpu.matmul %45, %47, %cst_48 {dimension_numbers = #tpu.dot_dimension_numbers<[1], [0], [0], [1], [0, 0, 1, 1], [], []>} : vector<32x128xf32>, vector<128x128xf32>, vector<32x128xf32> -> vector<32x128xf32>
    %49 = arith.addf %42, %48 : vector<32x128xf32>
    %c6 = arith.constant 6 : index
    %c0_49 = arith.constant 0 : index
    %c0_50 = arith.constant 0 : index
    %50 = vector.load %arg4[%c6, %c0_49, %c0_50] : memref<9x32x128xf32, #tpu.memory_space<vmem>>, vector<1x32x128xf32>
    %51 = vector.shape_cast %50 : vector<1x32x128xf32> to vector<32x128xf32>
    %cst_51 = arith.constant dense<0.000000e+00> : vector<32x128xf32>
    %52 = tpu.matmul %51, %6, %cst_51 {dimension_numbers = #tpu.dot_dimension_numbers<[1], [0], [0], [1], [0, 0, 1, 1], [], []>} : vector<32x128xf32>, vector<128x128xf32>, vector<32x128xf32> -> vector<32x128xf32>
    %c6_52 = arith.constant 6 : index
    %c0_53 = arith.constant 0 : index
    %c0_54 = arith.constant 0 : index
    %53 = vector.load %arg5[%c6_52, %c0_53, %c0_54] : memref<9x128x128xf32, #tpu.memory_space<vmem>>, vector<1x128x128xf32>
    %54 = vector.shape_cast %53 : vector<1x128x128xf32> to vector<128x128xf32>
    %cst_55 = arith.constant dense<0.000000e+00> : vector<32x128xf32>
    %55 = tpu.matmul %52, %54, %cst_55 {dimension_numbers = #tpu.dot_dimension_numbers<[1], [0], [0], [1], [0, 0, 1, 1], [], []>} : vector<32x128xf32>, vector<128x128xf32>, vector<32x128xf32> -> vector<32x128xf32>
    %56 = arith.addf %49, %55 : vector<32x128xf32>
    %c7 = arith.constant 7 : index
    %c0_56 = arith.constant 0 : index
    %c0_57 = arith.constant 0 : index
    %57 = vector.load %arg4[%c7, %c0_56, %c0_57] : memref<9x32x128xf32, #tpu.memory_space<vmem>>, vector<1x32x128xf32>
    %58 = vector.shape_cast %57 : vector<1x32x128xf32> to vector<32x128xf32>
    %cst_58 = arith.constant dense<0.000000e+00> : vector<32x128xf32>
    %59 = tpu.matmul %58, %6, %cst_58 {dimension_numbers = #tpu.dot_dimension_numbers<[1], [0], [0], [1], [0, 0, 1, 1], [], []>} : vector<32x128xf32>, vector<128x128xf32>, vector<32x128xf32> -> vector<32x128xf32>
    %c7_59 = arith.constant 7 : index
    %c0_60 = arith.constant 0 : index
    %c0_61 = arith.constant 0 : index
    %60 = vector.load %arg5[%c7_59, %c0_60, %c0_61] : memref<9x128x128xf32, #tpu.memory_space<vmem>>, vector<1x128x128xf32>
    %61 = vector.shape_cast %60 : vector<1x128x128xf32> to vector<128x128xf32>
    %cst_62 = arith.constant dense<0.000000e+00> : vector<32x128xf32>
    %62 = tpu.matmul %59, %61, %cst_62 {dimension_numbers = #tpu.dot_dimension_numbers<[1], [0], [0], [1], [0, 0, 1, 1], [], []>} : vector<32x128xf32>, vector<128x128xf32>, vector<32x128xf32> -> vector<32x128xf32>
    %63 = arith.addf %56, %62 : vector<32x128xf32>
    %c8 = arith.constant 8 : index
    %c0_63 = arith.constant 0 : index
    %c0_64 = arith.constant 0 : index
    %64 = vector.load %arg4[%c8, %c0_63, %c0_64] : memref<9x32x128xf32, #tpu.memory_space<vmem>>, vector<1x32x128xf32>
    %65 = vector.shape_cast %64 : vector<1x32x128xf32> to vector<32x128xf32>
    %cst_65 = arith.constant dense<0.000000e+00> : vector<32x128xf32>
    %66 = tpu.matmul %65, %6, %cst_65 {dimension_numbers = #tpu.dot_dimension_numbers<[1], [0], [0], [1], [0, 0, 1, 1], [], []>} : vector<32x128xf32>, vector<128x128xf32>, vector<32x128xf32> -> vector<32x128xf32>
    %c8_66 = arith.constant 8 : index
    %c0_67 = arith.constant 0 : index
    %c0_68 = arith.constant 0 : index
    %67 = vector.load %arg5[%c8_66, %c0_67, %c0_68] : memref<9x128x128xf32, #tpu.memory_space<vmem>>, vector<1x128x128xf32>
    %68 = vector.shape_cast %67 : vector<1x128x128xf32> to vector<128x128xf32>
    %cst_69 = arith.constant dense<0.000000e+00> : vector<32x128xf32>
    %69 = tpu.matmul %66, %68, %cst_69 {dimension_numbers = #tpu.dot_dimension_numbers<[1], [0], [0], [1], [0, 0, 1, 1], [], []>} : vector<32x128xf32>, vector<128x128xf32>, vector<32x128xf32> -> vector<32x128xf32>
    %70 = arith.addf %63, %69 : vector<32x128xf32>
    %c0_70 = arith.constant 0 : index
    %c0_71 = arith.constant 0 : index
    %71 = vector.load %arg6[%c0_70, %c0_71] : memref<1x128xf32, #tpu.memory_space<vmem>>, vector<1x128xf32>
    %72 = vector.broadcast %71 : vector<1x128xf32> to vector<32x128xf32>
    %73 = arith.addf %70, %72 : vector<32x128xf32>
    %c0_72 = arith.constant 0 : index
    %c0_73 = arith.constant 0 : index
    %74 = vector.load %arg7[%c0_72, %c0_73] : memref<32x128xf32, #tpu.memory_space<vmem>>, vector<32x128xf32>
    tpu.vector_store %arg7[%c0_72, %c0_73], %73 {strides = array<i32>} : memref<32x128xf32, #tpu.memory_space<vmem>>, vector<32x128xf32>,
    return
  }
  func.func @transform_0(%arg0: i32) -> (i32, i32) {
    %c0_i32 = arith.constant 0 : i32
    %c0_i32_0 = arith.constant 0 : i32
    %c0_i32_1 = arith.constant 0 : i32
    return %c0_i32, %c0_i32_0 : i32, i32
  }
  func.func @transform_1(%arg0: i32) -> (i32, i32) {
    %c0_i32 = arith.constant 0 : i32
    %c0_i32_0 = arith.constant 0 : i32
    %c0_i32_1 = arith.constant 0 : i32
    return %c0_i32, %c0_i32_0 : i32, i32
  }
  func.func @transform_2(%arg0: i32) -> (i32, i32) {
    %c0_i32 = arith.constant 0 : i32
    %c0_i32_0 = arith.constant 0 : i32
    %c0_i32_1 = arith.constant 0 : i32
    return %c0_i32, %c0_i32_0 : i32, i32
  }
  func.func @transform_3(%arg0: i32) -> (i32, i32, i32) {
    %c0_i32 = arith.constant 0 : i32
    %c0_i32_0 = arith.constant 0 : i32
    %c0_i32_1 = arith.constant 0 : i32
    %c0_i32_2 = arith.constant 0 : i32
    return %c0_i32, %c0_i32_0, %c0_i32_1 : i32, i32, i32
  }
  func.func @transform_4(%arg0: i32) -> (i32, i32, i32) {
    %c0_i32 = arith.constant 0 : i32
    %c0_i32_0 = arith.constant 0 : i32
    %c0_i32_1 = arith.constant 0 : i32
    %c0_i32_2 = arith.constant 0 : i32
    return %c0_i32, %c0_i32_0, %c0_i32_1 : i32, i32, i32
  }
  func.func @transform_5(%arg0: i32) -> (i32, i32) {
    %c0_i32 = arith.constant 0 : i32
    %c0_i32_0 = arith.constant 0 : i32
    %c0_i32_1 = arith.constant 0 : i32
    return %c0_i32, %c0_i32_0 : i32, i32
  }
  func.func @transform_6(%arg0: i32) -> (i32, i32) {
    %c0_i32 = arith.constant 0 : i32
    %c0_i32_0 = arith.constant 0 : i32
    %c0_i32_1 = arith.constant 0 : i32
    return %c0_i32, %c0_i32_0 : i32, i32
  }
}

</mosaic_0001>

<llo_original>
// kernel: model_tanh_forward.1
$region0: #{model_tanh_forward.1}
  #allocation0 [shape = 'u32[]', space=smem, size = 0x4, offset = 0x4, fixed_abs, tag = 'smem constant byte address 0x4 - core index']
  #allocation1 [shape = 'u32[144,128]{1,0:T(1,128)}', space=vmem, size = 0x12000, scoped, tag = 'internal scratch']
  %s0 = inlined_call_operand.vmem [shape: f32[128,32], index: 0, kind: input, shape index: {}]
  %s1 = inlined_call_operand.vmem [shape: f32[32,128], index: 1, kind: input, shape index: {}]
  %s2 = inlined_call_operand.vmem [shape: f32[1,128], index: 2, kind: input, shape index: {}]
  %s3 = inlined_call_operand.vmem [shape: f32[9,32,128], index: 3, kind: input, shape index: {}]
  %s4 = inlined_call_operand.vmem [shape: f32[9,128,128], index: 4, kind: input, shape index: {}]
  %s5 = inlined_call_operand.vmem [shape: f32[1,128], index: 5, kind: input, shape index: {}]
  %s6 = inlined_call_operand.hbm [shape: f32[32,128], index: 6, kind: output, shape index: {}]
  %s7 = sld [smem:[#allocation0]]
  $region34: #{model_tanh_forward.1} parent=0
    _
  %s9 = ssub.s32 1, %s7
  %s10 = scalar_select 0, %s9, %s7
  $region1: #{model_tanh_forward.1} parent=0
    #allocation2 [shape = 'u8[16384]{0}', space=vmem, size = 0x4000, scoped, tag = 'output window, operand 0, single buffered']
    #allocation3 [shape = 's32[1]{0}', space=sflag, size = 0x4, scoped, tag = 'scoped memory for model_tanh_forward.1']
    %11 = vsyncpa [#allocation3], 0
    // Predicated region
    $region2: #{model_tanh_forward.1} parent=1 // pred_check
      _
    $region3: #{model_tanh_forward.1} parent=1 // pred_check_branch
      %13 = sbr.rel (0) target = $region5
    $region4: #{model_tanh_forward.1} parent=1 // pred_region
      _
    $region5: #{model_tanh_forward.1} parent=1 // pred_fallthru
      _
    // Predicated region
    $region6: #{model_tanh_forward.1} parent=1 // pred_check
      _
    $region7: #{model_tanh_forward.1} parent=1 // pred_check_branch
      %15 = sbr.rel (0) target = $region9
    $region8: #{model_tanh_forward.1} parent=1 // pred_region
      _
    $region9: #{model_tanh_forward.1} parent=1 // pred_fallthru
      _
    // Predicated region
    $region10: #{model_tanh_forward.1} parent=1 // pred_check
      _
    $region11: #{model_tanh_forward.1} parent=1 // pred_check_branch
      %17 = sbr.rel (0) target = $region13
    $region12: #{model_tanh_forward.1} parent=1 // pred_region
      _
    $region13: #{model_tanh_forward.1} parent=1 // pred_fallthru
      _
    // Predicated region
    $region14: #{model_tanh_forward.1} parent=1 // pred_check
      _
    $region15: #{model_tanh_forward.1} parent=1 // pred_check_branch
      %19 = sbr.rel (0) target = $region17
    $region16: #{model_tanh_forward.1} parent=1 // pred_region
      _
    $region17: #{model_tanh_forward.1} parent=1 // pred_fallthru
      _
    // Predicated region
    $region18: #{model_tanh_forward.1} parent=1 // pred_check
      _
    $region19: #{model_tanh_forward.1} parent=1 // pred_check_branch
      %21 = sbr.rel (0) target = $region21
    $region20: #{model_tanh_forward.1} parent=1 // pred_region
      _
    $region21: #{model_tanh_forward.1} parent=1 // pred_fallthru
      _
    // Predicated region
    $region22: #{model_tanh_forward.1} parent=1 // pred_check
      _
    $region23: #{model_tanh_forward.1} parent=1 // pred_check_branch
      %23 = sbr.rel (0) target = $region25
    $region24: #{model_tanh_forward.1} parent=1 // pred_region
      _
    $region25: #{model_tanh_forward.1} parent=1 // pred_fallthru
      _
    %v24 = vld [vmem:[%s0] sm:$0xff]
    %v25 = vld [vmem:[%s0 + $0x8] sm:$0xff]
    %v26 = vld [vmem:[%s0 + $0x10] sm:$0xff]
    %v27 = vld [vmem:[%s0 + $0x18] sm:$0xff]
    %v28 = vld [vmem:[%s0 + $0x20] sm:$0xff]
    %v29 = vld [vmem:[%s0 + $0x28] sm:$0xff]
    %v30 = vld [vmem:[%s0 + $0x30] sm:$0xff]
    %v31 = vld [vmem:[%s0 + $0x38] sm:$0xff]
    %v32 = vld [vmem:[%s0 + $0x40] sm:$0xff]
    %v33 = vld [vmem:[%s0 + $0x48] sm:$0xff]
    %v34 = vld [vmem:[%s0 + $0x50] sm:$0xff]
    %v35 = vld [vmem:[%s0 + $0x58] sm:$0xff]
    %v36 = vld [vmem:[%s0 + $0x60] sm:$0xff]
    %v37 = vld [vmem:[%s0 + $0x68] sm:$0xff]
    %v38 = vld [vmem:[%s0 + $0x70] sm:$0xff]
    %v39 = vld [vmem:[%s0 + $0x78] sm:$0xff]
    %v40 = vld [vmem:[%s1] sm:$0xff]
    %v41 = vld [vmem:[%s1 + $0x8] sm:$0xff]
    %v42 = vld [vmem:[%s1 + $0x10] sm:$0xff]
    %v43 = vld [vmem:[%s1 + $0x18] sm:$0xff]
    %v44 = vld [vmem:[%s2] sm:$0x1]
    %v46 = vlaneseq
    %v47 = vshrl.u32 %v46, 7
    %v48 = vsub.s32 0, %v47
    %v49 = vrot.slane %v44, %v48
    %vm51 = vcmask 261120
    %v53 = vsel %vm51, %v24, 0
    %v56 = vsel %vm51, %v25, 0
    %v59 = vsel %vm51, %v26, 0
    %v62 = vsel %vm51, %v27, 0
    %v65 = vsel %vm51, %v28, 0
    %v68 = vsel %vm51, %v29, 0
    %v71 = vsel %vm51, %v30, 0
    %v74 = vsel %vm51, %v31, 0
    %v77 = vsel %vm51, %v32, 0
    %v80 = vsel %vm51, %v33, 0
    %v83 = vsel %vm51, %v34, 0
    %v86 = vsel %vm51, %v35, 0
    %v89 = vsel %vm51, %v36, 0
    %v92 = vsel %vm51, %v37, 0
    %v95 = vsel %vm51, %v38, 0
    %v98 = vsel %vm51, %v39, 0
    %100 = vmatprep.subr.mxu0 0.0
    %101 = vmatpush1.msra.mxu0 %v40
    %102 = vmatprep.subr.mxu0 0.0
    %103 = vmatpush1.msra.mxu0 %v41
    %104 = vmatprep.subr.mxu0 0.0
    %105 = vmatpush1.msra.mxu0 %v42
    %106 = vmatprep.subr.mxu0 0.0
    %107 = vmatpush1.msra.mxu0 %v43
    %108 = vmatprep.subr.mxu0 0.0
    %109 = vmatpush1.msra.mxu0 0.0
    %110 = vmatprep.subr.mxu0 0.0
    %111 = vmatpush1.msra.mxu0 0.0
    %112 = vmatprep.subr.mxu0 0.0
    %113 = vmatpush1.msra.mxu0 0.0
    %114 = vmatprep.subr.mxu0 0.0
    %115 = vmatpush1.msra.mxu0 0.0
    %116 = vmatprep.subr.mxu0 0.0
    %117 = vmatpush1.msra.mxu0 0.0
    %118 = vmatprep.subr.mxu0 0.0
    %119 = vmatpush1.msra.mxu0 0.0
    %120 = vmatprep.subr.mxu0 0.0
    %121 = vmatpush1.msra.mxu0 0.0
    %122 = vmatprep.subr.mxu0 0.0
    %123 = vmatpush1.msra.mxu0 0.0
    %124 = vmatprep.subr.mxu0 0.0
    %125 = vmatpush1.msra.mxu0 0.0
    %126 = vmatprep.subr.mxu0 0.0
    %127 = vmatpush1.msra.mxu0 0.0
    %128 = vmatprep.subr.mxu0 0.0
    %129 = vmatpush1.msra.mxu0 0.0
    %130 = vmatprep.subr.mxu0 0.0
    %131 = vmatpush1.msra.mxu0 0.0
    %132 = vmatprep.subr.mxu0 0.0
    %133 = vmatpush1.msra.mxu0 0.0
    %134 = vmatprep.subr.mxu0 0.0
    %135 = vmatpush1.msra.mxu0 0.0
    %136 = vmatprep.subr.mxu0 0.0
    %137 = vmatpush1.msra.mxu0 0.0
    %138 = vmatprep.subr.mxu0 0.0
    %139 = vmatpush1.msra.mxu0 0.0
    %140 = vmatprep.subr.mxu0 0.0
    %141 = vmatpush1.msra.mxu0 0.0
    %142 = vmatprep.subr.mxu0 0.0
    %143 = vmatpush1.msra.mxu0 0.0
    %144 = vmatprep.subr.mxu0 0.0
    %145 = vmatpush1.msra.mxu0 0.0
    %146 = vmatprep.subr.mxu0 0.0
    %147 = vmatpush1.msra.mxu0 0.0
    %148 = vmatprep.subr.mxu0 0.0
    %149 = vmatpush1.msra.mxu0 0.0
    %150 = vmatprep.subr.mxu0 0.0
    %151 = vmatpush1.msra.mxu0 0.0
    %152 = vmatprep.subr.mxu0 0.0
    %153 = vmatpush1.msra.mxu0 0.0
    %154 = vmatprep.subr.mxu0 0.0
    %155 = vmatpush1.msra.mxu0 0.0
    %156 = vmatprep.subr.mxu0 0.0
    %157 = vmatpush1.msra.mxu0 0.0
    %158 = vmatprep.subr.mxu0 0.0
    %159 = vmatpush1.msra.mxu0 0.0
    %160 = vmatprep.subr.mxu0 0.0
    %161 = vmatpush1.msra.mxu0 0.0
    %162 = vmatprep.subr.mxu0 0.0
    %163 = vmatpush1.msra.mxu0 0.0
    %164 = vmatprep.mubr.f32.mxu0 0.0
    %165 = vmatmul.mubr.f32.gmra.mrb[0].mxu0 %v53
    %v166 = vpop.f32.mrb[0].mxu0
    %v167 = vadd.f32 %v49, %v166
    %v168 = vpop.f32.mrb[0].mxu0
    %169 = vmatprep.mubr.f32.mxu0 0.0
    %170 = vmatmul.mubr.f32.gmra.mrb[0].mxu0 %v56
    %v171 = vpop.f32.mrb[0].mxu0
    %v172 = vadd.f32 %v49, %v171
    %v173 = vpop.f32.mrb[0].mxu0
    %174 = vmatprep.mubr.f32.mxu0 0.0
    %175 = vmatmul.mubr.f32.gmra.mrb[0].mxu0 %v59
    %v176 = vpop.f32.mrb[0].mxu0
    %v177 = vadd.f32 %v49, %v176
    %v178 = vpop.f32.mrb[0].mxu0
    %179 = vmatprep.mubr.f32.mxu0 0.0
    %180 = vmatmul.mubr.f32.gmra.mrb[0].mxu0 %v62
    %v181 = vpop.f32.mrb[0].mxu0
    %v182 = vadd.f32 %v49, %v181
    %v183 = vpop.f32.mrb[0].mxu0
    %184 = vmatprep.mubr.f32.mxu0 0.0
    %185 = vmatmul.mubr.f32.gmra.mrb[0].mxu0 %v65
    %v186 = vpop.f32.mrb[0].mxu0
    %v187 = vadd.f32 %v49, %v186
    %v188 = vpop.f32.mrb[0].mxu0
    %189 = vmatprep.mubr.f32.mxu0 0.0
    %190 = vmatmul.mubr.f32.gmra.mrb[0].mxu0 %v68
    %v191 = vpop.f32.mrb[0].mxu0
    %v192 = vadd.f32 %v49, %v191
    %v193 = vpop.f32.mrb[0].mxu0
    %194 = vmatprep.mubr.f32.mxu0 0.0
    %195 = vmatmul.mubr.f32.gmra.mrb[0].mxu0 %v71
    %v196 = vpop.f32.mrb[0].mxu0
    %v197 = vadd.f32 %v49, %v196
    %v198 = vpop.f32.mrb[0].mxu0
    %199 = vmatprep.mubr.f32.mxu0 0.0
    %200 = vmatmul.mubr.f32.gmra.mrb[0].mxu0 %v74
    %v201 = vpop.f32.mrb[0].mxu0
    %v202 = vadd.f32 %v49, %v201
    %v203 = vpop.f32.mrb[0].mxu0
    %204 = vmatprep.mubr.f32.mxu0 0.0
    %205 = vmatmul.mubr.f32.gmra.mrb[0].mxu0 %v77
    %v206 = vpop.f32.mrb[0].mxu0
    %v207 = vadd.f32 %v49, %v206
    %v208 = vpop.f32.mrb[0].mxu0
    %209 = vmatprep.mubr.f32.mxu0 0.0
    %210 = vmatmul.mubr.f32.gmra.mrb[0].mxu0 %v80
    %v211 = vpop.f32.mrb[0].mxu0
    %v212 = vadd.f32 %v49, %v211
    %v213 = vpop.f32.mrb[0].mxu0
    %214 = vmatprep.mubr.f32.mxu0 0.0
    %215 = vmatmul.mubr.f32.gmra.mrb[0].mxu0 %v83
    %v216 = vpop.f32.mrb[0].mxu0
    %v217 = vadd.f32 %v49, %v216
    %v218 = vpop.f32.mrb[0].mxu0
    %219 = vmatprep.mubr.f32.mxu0 0.0
    %220 = vmatmul.mubr.f32.gmra.mrb[0].mxu0 %v86
    %v221 = vpop.f32.mrb[0].mxu0
    %v222 = vadd.f32 %v49, %v221
    %v223 = vpop.f32.mrb[0].mxu0
    %224 = vmatprep.mubr.f32.mxu0 0.0
    %225 = vmatmul.mubr.f32.gmra.mrb[0].mxu0 %v89
    %v226 = vpop.f32.mrb[0].mxu0
    %v227 = vadd.f32 %v49, %v226
    %v228 = vpop.f32.mrb[0].mxu0
    %229 = vmatprep.mubr.f32.mxu0 0.0
    %230 = vmatmul.mubr.f32.gmra.mrb[0].mxu0 %v92
    %v231 = vpop.f32.mrb[0].mxu0
    %v232 = vadd.f32 %v49, %v231
    %v233 = vpop.f32.mrb[0].mxu0
    %234 = vmatprep.mubr.f32.mxu0 0.0
    %235 = vmatmul.mubr.f32.gmra.mrb[0].mxu0 %v95
    %v236 = vpop.f32.mrb[0].mxu0
    %v237 = vadd.f32 %v49, %v236
    %v238 = vpop.f32.mrb[0].mxu0
    %239 = vmatprep.mubr.f32.mxu0 0.0
    %240 = vmatmul.mubr.f32.gmra.mrb[0].mxu0 %v98
    %v241 = vpop.f32.mrb[0].mxu0
    %v242 = vadd.f32 %v49, %v241
    %v243 = vpop.f32.mrb[0].mxu0
    %244 = vdwg.mxu0
    %v245 = vtanh.pop %v167
    %v246 = vtanh.pop %v172
    %v247 = vtanh.pop %v177
    %v248 = vtanh.pop %v182
    %v249 = vtanh.pop %v187
    %v250 = vtanh.pop %v192
    %v251 = vtanh.pop %v197
    %v252 = vtanh.pop %v202
    %v253 = vtanh.pop %v207
    %v254 = vtanh.pop %v212
    %v255 = vtanh.pop %v217
    %v256 = vtanh.pop %v222
    %v257 = vtanh.pop %v227
    %v258 = vtanh.pop %v232
    %v259 = vtanh.pop %v237
    %v260 = vtanh.pop %v242
    %v261 = vld [vmem:[%s3] sm:$0xff]
    %v262 = vld [vmem:[%s3 + $0x8] sm:$0xff]
    %v263 = vld [vmem:[%s3 + $0x10] sm:$0xff]
    %v264 = vld [vmem:[%s3 + $0x18] sm:$0xff]
    %265 = vmatprep.subr.mxu0 0.0
    %266 = vmatpush1.msra.mxu0 %v245
    %267 = vmatprep.subr.mxu0 0.0
    %268 = vmatpush1.msra.mxu0 %v246
    %269 = vmatprep.subr.mxu0 0.0
    %270 = vmatpush1.msra.mxu0 %v247
    %271 = vmatprep.subr.mxu0 0.0
    %272 = vmatpush1.msra.mxu0 %v248
    %273 = vmatprep.subr.mxu0 0.0
    %274 = vmatpush1.msra.mxu0 %v249
    %275 = vmatprep.subr.mxu0 0.0
    %276 = vmatpush1.msra.mxu0 %v250
    %277 = vmatprep.subr.mxu0 0.0
    %278 = vmatpush1.msra.mxu0 %v251
    %279 = vmatprep.subr.mxu0 0.0
    %280 = vmatpush1.msra.mxu0 %v252
    %281 = vmatprep.subr.mxu0 0.0
    %282 = vmatpush1.msra.mxu0 %v253
    %283 = vmatprep.subr.mxu0 0.0
    %284 = vmatpush1.msra.mxu0 %v254
    %285 = vmatprep.subr.mxu0 0.0
    %286 = vmatpush1.msra.mxu0 %v255
    %287 = vmatprep.subr.mxu0 0.0
    %288 = vmatpush1.msra.mxu0 %v256
    %289 = vmatprep.subr.mxu0 0.0
    %290 = vmatpush1.msra.mxu0 %v257
    %291 = vmatprep.subr.mxu0 0.0
    %292 = vmatpush1.msra.mxu0 %v258
    %293 = vmatprep.subr.mxu0 0.0
    %294 = vmatpush1.msra.mxu0 %v259
    %295 = vmatprep.subr.mxu0 0.0
    %296 = vmatpush1.msra.mxu0 %v260
    %297 = vmatprep.subr.mxu0 0.0
    %298 = vmatpush1.msra.mxu0 0.0
    %299 = vmatprep.subr.mxu0 0.0
    %300 = vmatpush1.msra.mxu0 0.0
    %301 = vmatprep.subr.mxu0 0.0
    %302 = vmatpush1.msra.mxu0 0.0
    %303 = vmatprep.subr.mxu0 0.0
    %304 = vmatpush1.msra.mxu0 0.0
    %305 = vmatprep.subr.mxu0 0.0
    %306 = vmatpush1.msra.mxu0 0.0
    %307 = vmatprep.subr.mxu0 0.0
    %308 = vmatpush1.msra.mxu0 0.0
    %309 = vmatprep.subr.mxu0 0.0
    %310 = vmatpush1.msra.mxu0 0.0
    %311 = vmatprep.subr.mxu0 0.0
    %312 = vmatpush1.msra.mxu0 0.0
    %313 = vmatprep.subr.mxu0 0.0
    %314 = vmatpush1.msra.mxu0 0.0
    %315 = vmatprep.subr.mxu0 0.0
    %316 = vmatpush1.msra.mxu0 0.0
    %317 = vmatprep.subr.mxu0 0.0
    %318 = vmatpush1.msra.mxu0 0.0
    %319 = vmatprep.subr.mxu0 0.0
    %320 = vmatpush1.msra.mxu0 0.0
    %321 = vmatprep.subr.mxu0 0.0
    %322 = vmatpush1.msra.mxu0 0.0
    %323 = vmatprep.subr.mxu0 0.0
    %324 = vmatpush1.msra.mxu0 0.0
    %325 = vmatprep.subr.mxu0 0.0
    %326 = vmatpush1.msra.mxu0 0.0
    %327 = vmatprep.subr.mxu0 0.0
    %328 = vmatpush1.msra.mxu0 0.0
    %329 = vmatprep.mubr.f32.mxu0 0.0
    %330 = vmatmul.mubr.f32.gmra.mrb[0].mxu0 %v261
    %v331 = vpop.f32.mrb[0].mxu0
    %v332 = vadd.f32 0.0, %v331
    %v333 = vpop.f32.mrb[0].mxu0
    %334 = vmatprep.mubr.f32.mxu0 0.0
    %335 = vmatmul.mubr.f32.gmra.mrb[0].mxu0 %v262
    %v336 = vpop.f32.mrb[0].mxu0
    %v337 = vadd.f32 0.0, %v336
    %v338 = vpop.f32.mrb[0].mxu0
    %339 = vmatprep.mubr.f32.mxu0 0.0
    %340 = vmatmul.mubr.f32.gmra.mrb[0].mxu0 %v263
    %v341 = vpop.f32.mrb[0].mxu0
    %v342 = vadd.f32 0.0, %v341
    %v343 = vpop.f32.mrb[0].mxu0
    %344 = vmatprep.mubr.f32.mxu0 0.0
    %345 = vmatmul.mubr.f32.gmra.mrb[0].mxu0 %v264
    %v346 = vpop.f32.mrb[0].mxu0
    %v347 = vadd.f32 0.0, %v346
    %v348 = vpop.f32.mrb[0].mxu0
    %349 = vdwg.mxu0
    %v350 = vld [vmem:[%s4] sm:$0xff]
    %v351 = vld [vmem:[%s4 + $0x8] sm:$0xff]
    %v352 = vld [vmem:[%s4 + $0x10] sm:$0xff]
    %v353 = vld [vmem:[%s4 + $0x18] sm:$0xff]
    %v354 = vld [vmem:[%s4 + $0x20] sm:$0xff]
    %v355 = vld [vmem:[%s4 + $0x28] sm:$0xff]
    %v356 = vld [vmem:[%s4 + $0x30] sm:$0xff]
    %v357 = vld [vmem:[%s4 + $0x38] sm:$0xff]
    %v358 = vld [vmem:[%s4 + $0x40] sm:$0xff]
    %v359 = vld [vmem:[%s4 + $0x48] sm:$0xff]
    %v360 = vld [vmem:[%s4 + $0x50] sm:$0xff]
    %v361 = vld [vmem:[%s4 + $0x58] sm:$0xff]
    %v362 = vld [vmem:[%s4 + $0x60] sm:$0xff]
    %v363 = vld [vmem:[%s4 + $0x68] sm:$0xff]
    %v364 = vld [vmem:[%s4 + $0x70] sm:$0xff]
    %v365 = vld [vmem:[%s4 + $0x78] sm:$0xff]
    %s366 = scalar_lea.vmem %s3, 32
    %v367 = vld [vmem:[%s366] sm:$0xff]
    %v368 = vld [vmem:[%s366 + $0x8] sm:$0xff]
    %v369 = vld [vmem:[%s366 + $0x10] sm:$0xff]
    %v370 = vld [vmem:[%s366 + $0x18] sm:$0xff]
    %371 = vmatprep.subr.mxu0 0.0
    %372 = vmatpush1.msra.mxu0 %v245
    %373 = vmatprep.subr.mxu0 0.0
    %374 = vmatpush1.msra.mxu0 %v246
    %375 = vmatprep.subr.mxu0 0.0
    %376 = vmatpush1.msra.mxu0 %v247
    %377 = vmatprep.subr.mxu0 0.0
    %378 = vmatpush1.msra.mxu0 %v248
    %379 = vmatprep.subr.mxu0 0.0
    %380 = vmatpush1.msra.mxu0 %v249
    %381 = vmatprep.subr.mxu0 0.0
    %382 = vmatpush1.msra.mxu0 %v250
    %383 = vmatprep.subr.mxu0 0.0
    %384 = vmatpush1.msra.mxu0 %v251
    %385 = vmatprep.subr.mxu0 0.0
    %386 = vmatpush1.msra.mxu0 %v252
    %387 = vmatprep.subr.mxu0 0.0
    %388 = vmatpush1.msra.mxu0 %v253
    %389 = vmatprep.subr.mxu0 0.0
    %390 = vmatpush1.msra.mxu0 %v254
    %391 = vmatprep.subr.mxu0 0.0
    %392 = vmatpush1.msra.mxu0 %v255
    %393 = vmatprep.subr.mxu0 0.0
    %394 = vmatpush1.msra.mxu0 %v256
    %395 = vmatprep.subr.mxu0 0.0
    %396 = vmatpush1.msra.mxu0 %v257
    %397 = vmatprep.subr.mxu0 0.0
    %398 = vmatpush1.msra.mxu0 %v258
    %399 = vmatprep.subr.mxu0 0.0
    %400 = vmatpush1.msra.mxu0 %v259
    %401 = vmatprep.subr.mxu0 0.0
    %402 = vmatpush1.msra.mxu0 %v260
    %403 = vmatprep.subr.mxu0 0.0
    %404 = vmatpush1.msra.mxu0 0.0
    %405 = vmatprep.subr.mxu0 0.0
    %406 = vmatpush1.msra.mxu0 0.0
    %407 = vmatprep.subr.mxu0 0.0
    %408 = vmatpush1.msra.mxu0 0.0
    %409 = vmatprep.subr.mxu0 0.0
    %410 = vmatpush1.msra.mxu0 0.0
    %411 = vmatprep.subr.mxu0 0.0
    %412 = vmatpush1.msra.mxu0 0.0
    %413 = vmatprep.subr.mxu0 0.0
    %414 = vmatpush1.msra.mxu0 0.0
    %415 = vmatprep.subr.mxu0 0.0
    %416 = vmatpush1.msra.mxu0 0.0
    %417 = vmatprep.subr.mxu0 0.0
    %418 = vmatpush1.msra.mxu0 0.0
    %419 = vmatprep.subr.mxu0 0.0
    %420 = vmatpush1.msra.mxu0 0.0
    %421 = vmatprep.subr.mxu0 0.0
    %422 = vmatpush1.msra.mxu0 0.0
    %423 = vmatprep.subr.mxu0 0.0
    %424 = vmatpush1.msra.mxu0 0.0
    %425 = vmatprep.subr.mxu0 0.0
    %426 = vmatpush1.msra.mxu0 0.0
    %427 = vmatprep.subr.mxu0 0.0
    %428 = vmatpush1.msra.mxu0 0.0
    %429 = vmatprep.subr.mxu0 0.0
    %430 = vmatpush1.msra.mxu0 0.0
    %431 = vmatprep.subr.mxu0 0.0
    %432 = vmatpush1.msra.mxu0 0.0
    %433 = vmatprep.subr.mxu0 0.0
    %434 = vmatpush1.msra.mxu0 0.0
    %435 = vmatprep.mubr.f32.mxu0 0.0
    %436 = vmatmul.mubr.f32.gmra.mrb[0].mxu0 %v367
    %v437 = vpop.f32.mrb[0].mxu0
    %v438 = vadd.f32 0.0, %v437
    %v439 = vpop.f32.mrb[0].mxu0
    %440 = vmatprep.mubr.f32.mxu0 0.0
    %441 = vmatmul.mubr.f32.gmra.mrb[0].mxu0 %v368
    %v442 = vpop.f32.mrb[0].mxu0
    %v443 = vadd.f32 0.0, %v442
    %v444 = vpop.f32.mrb[0].mxu0
    %445 = vmatprep.mubr.f32.mxu0 0.0
    %446 = vmatmul.mubr.f32.gmra.mrb[0].mxu0 %v369
    %v447 = vpop.f32.mrb[0].mxu0
    %v448 = vadd.f32 0.0, %v447
    %v449 = vpop.f32.mrb[0].mxu0
    %450 = vmatprep.mubr.f32.mxu0 0.0
    %451 = vmatmul.mubr.f32.gmra.mrb[0].mxu0 %v370
    %v452 = vpop.f32.mrb[0].mxu0
    %v453 = vadd.f32 0.0, %v452
    %v454 = vpop.f32.mrb[0].mxu0
    %455 = vdwg.mxu0
    %s456 = scalar_lea.vmem %s4, 128
    %v457 = vld [vmem:[%s456] sm:$0xff]
    %v458 = vld [vmem:[%s456 + $0x8] sm:$0xff]
    %v459 = vld [vmem:[%s456 + $0x10] sm:$0xff]
    %v460 = vld [vmem:[%s456 + $0x18] sm:$0xff]
    %v461 = vld [vmem:[%s456 + $0x20] sm:$0xff]
    %v462 = vld [vmem:[%s456 + $0x28] sm:$0xff]
    %v463 = vld [vmem:[%s456 + $0x30] sm:$0xff]
    %v464 = vld [vmem:[%s456 + $0x38] sm:$0xff]
    %v465 = vld [vmem:[%s456 + $0x40] sm:$0xff]
    %v466 = vld [vmem:[%s456 + $0x48] sm:$0xff]
    %v467 = vld [vmem:[%s456 + $0x50] sm:$0xff]
    %v468 = vld [vmem:[%s456 + $0x58] sm:$0xff]
    %v469 = vld [vmem:[%s456 + $0x60] sm:$0xff]
    %v470 = vld [vmem:[%s456 + $0x68] sm:$0xff]
    %v471 = vld [vmem:[%s456 + $0x70] sm:$0xff]
    %v472 = vld [vmem:[%s456 + $0x78] sm:$0xff]
    %473 = vmatprep.subr.mxu0 0.0
    %474 = vmatpush1.msra.mxu0 %v457
    %475 = vmatprep.subr.mxu0 0.0
    %476 = vmatpush1.msra.mxu0 %v458
    %477 = vmatprep.subr.mxu0 0.0
    %478 = vmatpush1.msra.mxu0 %v459
    %479 = vmatprep.subr.mxu0 0.0
    %480 = vmatpush1.msra.mxu0 %v460
    %481 = vmatprep.subr.mxu0 0.0
    %482 = vmatpush1.msra.mxu0 %v461
    %483 = vmatprep.subr.mxu0 0.0
    %484 = vmatpush1.msra.mxu0 %v462
    %485 = vmatprep.subr.mxu0 0.0
    %486 = vmatpush1.msra.mxu0 %v463
    %487 = vmatprep.subr.mxu0 0.0
    %488 = vmatpush1.msra.mxu0 %v464
    %489 = vmatprep.subr.mxu0 0.0
    %490 = vmatpush1.msra.mxu0 %v465
    %491 = vmatprep.subr.mxu0 0.0
    %492 = vmatpush1.msra.mxu0 %v466
    %493 = vmatprep.subr.mxu0 0.0
    %494 = vmatpush1.msra.mxu0 %v467
    %495 = vmatprep.subr.mxu0 0.0
    %496 = vmatpush1.msra.mxu0 %v468
    %497 = vmatprep.subr.mxu0 0.0
    %498 = vmatpush1.msra.mxu0 %v469
    %499 = vmatprep.subr.mxu0 0.0
    %500 = vmatpush1.msra.mxu0 %v470
    %501 = vmatprep.subr.mxu0 0.0
    %502 = vmatpush1.msra.mxu0 %v471
    %503 = vmatprep.subr.mxu0 0.0
    %504 = vmatpush1.msra.mxu0 %v472
    %505 = vmatprep.subr.mxu0 0.0
    %506 = vmatpush1.msra.mxu0 0.0
    %507 = vmatprep.subr.mxu0 0.0
    %508 = vmatpush1.msra.mxu0 0.0
    %509 = vmatprep.subr.mxu0 0.0
    %510 = vmatpush1.msra.mxu0 0.0
    %511 = vmatprep.subr.mxu0 0.0
    %512 = vmatpush1.msra.mxu0 0.0
    %513 = vmatprep.subr.mxu0 0.0
    %514 = vmatpush1.msra.mxu0 0.0
    %515 = vmatprep.subr.mxu0 0.0
    %516 = vmatpush1.msra.mxu0 0.0
    %517 = vmatprep.subr.mxu0 0.0
    %518 = vmatpush1.msra.mxu0 0.0
    %519 = vmatprep.subr.mxu0 0.0
    %520 = vmatpush1.msra.mxu0 0.0
    %521 = vmatprep.subr.mxu0 0.0
    %522 = vmatpush1.msra.mxu0 0.0
    %523 = vmatprep.subr.mxu0 0.0
    %524 = vmatpush1.msra.mxu0 0.0
    %525 = vmatprep.subr.mxu0 0.0
    %526 = vmatpush1.msra.mxu0 0.0
    %527 = vmatprep.subr.mxu0 0.0
    %528 = vmatpush1.msra.mxu0 0.0
    %529 = vmatprep.subr.mxu0 0.0
    %530 = vmatpush1.msra.mxu0 0.0
    %531 = vmatprep.subr.mxu0 0.0
    %532 = vmatpush1.msra.mxu0 0.0
    %533 = vmatprep.subr.mxu0 0.0
    %534 = vmatpush1.msra.mxu0 0.0
    %535 = vmatprep.subr.mxu0 0.0
    %536 = vmatpush1.msra.mxu0 0.0
    %537 = vmatprep.mubr.f32.mxu0 0.0
    %538 = vmatmul.mubr.f32.gmra.mrb[0].mxu0 %v438
    %v539 = vpop.f32.mrb[0].mxu0
    %v540 = vadd.f32 0.0, %v539
    %v541 = vpop.f32.mrb[0].mxu0
    %542 = vmatprep.mubr.f32.mxu0 0.0
    %543 = vmatmul.mubr.f32.gmra.mrb[0].mxu0 %v443
    %v544 = vpop.f32.mrb[0].mxu0
    %v545 = vadd.f32 0.0, %v544
    %v546 = vpop.f32.mrb[0].mxu0
    %547 = vmatprep.mubr.f32.mxu0 0.0
    %548 = vmatmul.mubr.f32.gmra.mrb[0].mxu0 %v448
    %v549 = vpop.f32.mrb[0].mxu0
    %v550 = vadd.f32 0.0, %v549
    %v551 = vpop.f32.mrb[0].mxu0
    %552 = vmatprep.mubr.f32.mxu0 0.0
    %553 = vmatmul.mubr.f32.gmra.mrb[0].mxu0 %v453
    %v554 = vpop.f32.mrb[0].mxu0
    %v555 = vadd.f32 0.0, %v554
    %v556 = vpop.f32.mrb[0].mxu0
    %557 = vdwg.mxu0
    %558 = vmatprep.subr.mxu0 0.0
    %559 = vmatpush1.msra.mxu0 %v350
    %560 = vmatprep.subr.mxu0 0.0
    %561 = vmatpush1.msra.mxu0 %v351
    %562 = vmatprep.subr.mxu0 0.0
    %563 = vmatpush1.msra.mxu0 %v352
    %564 = vmatprep.subr.mxu0 0.0
    %565 = vmatpush1.msra.mxu0 %v353
    %566 = vmatprep.subr.mxu0 0.0
    %567 = vmatpush1.msra.mxu0 %v354
    %568 = vmatprep.subr.mxu0 0.0
    %569 = vmatpush1.msra.mxu0 %v355
    %570 = vmatprep.subr.mxu0 0.0
    %571 = vmatpush1.msra.mxu0 %v356
    %572 = vmatprep.subr.mxu0 0.0
    %573 = vmatpush1.msra.mxu0 %v357
    %574 = vmatprep.subr.mxu0 0.0
    %575 = vmatpush1.msra.mxu0 %v358
    %576 = vmatprep.subr.mxu0 0.0
    %577 = vmatpush1.msra.mxu0 %v359
    %578 = vmatprep.subr.mxu0 0.0
    %579 = vmatpush1.msra.mxu0 %v360
    %580 = vmatprep.subr.mxu0 0.0
    %581 = vmatpush1.msra.mxu0 %v361
    %582 = vmatprep.subr.mxu0 0.0
    %583 = vmatpush1.msra.mxu0 %v362
    %584 = vmatprep.subr.mxu0 0.0
    %585 = vmatpush1.msra.mxu0 %v363
    %586 = vmatprep.subr.mxu0 0.0
    %587 = vmatpush1.msra.mxu0 %v364
    %588 = vmatprep.subr.mxu0 0.0
    %589 = vmatpush1.msra.mxu0 %v365
    %590 = vmatprep.subr.mxu0 0.0
    %591 = vmatpush1.msra.mxu0 0.0
    %592 = vmatprep.subr.mxu0 0.0
    %593 = vmatpush1.msra.mxu0 0.0
    %594 = vmatprep.subr.mxu0 0.0
    %595 = vmatpush1.msra.mxu0 0.0
    %596 = vmatprep.subr.mxu0 0.0
    %597 = vmatpush1.msra.mxu0 0.0
    %598 = vmatprep.subr.mxu0 0.0
    %599 = vmatpush1.msra.mxu0 0.0
    %600 = vmatprep.subr.mxu0 0.0
    %601 = vmatpush1.msra.mxu0 0.0
    %602 = vmatprep.subr.mxu0 0.0
    %603 = vmatpush1.msra.mxu0 0.0
    %604 = vmatprep.subr.mxu0 0.0
    %605 = vmatpush1.msra.mxu0 0.0
    %606 = vmatprep.subr.mxu0 0.0
    %607 = vmatpush1.msra.mxu0 0.0
    %608 = vmatprep.subr.mxu0 0.0
    %609 = vmatpush1.msra.mxu0 0.0
    %610 = vmatprep.subr.mxu0 0.0
    %611 = vmatpush1.msra.mxu0 0.0
    %612 = vmatprep.subr.mxu0 0.0
    %613 = vmatpush1.msra.mxu0 0.0
    %614 = vmatprep.subr.mxu0 0.0
    %615 = vmatpush1.msra.mxu0 0.0
    %616 = vmatprep.subr.mxu0 0.0
    %617 = vmatpush1.msra.mxu0 0.0
    %618 = vmatprep.subr.mxu0 0.0
    %619 = vmatpush1.msra.mxu0 0.0
    %620 = vmatprep.subr.mxu0 0.0
    %621 = vmatpush1.msra.mxu0 0.0
    %622 = vmatprep.mubr.f32.mxu0 0.0
    %623 = vmatmul.mubr.f32.gmra.mrb[0].mxu0 %v332
    %v624 = vpop.f32.mrb[0].mxu0
    %v625 = vadd.f32 %v540, %v624
    %v626 = vpop.f32.mrb[0].mxu0
    %627 = vmatprep.mubr.f32.mxu0 0.0
    %628 = vmatmul.mubr.f32.gmra.mrb[0].mxu0 %v337
    %v629 = vpop.f32.mrb[0].mxu0
    %v630 = vadd.f32 %v545, %v629
    %v631 = vpop.f32.mrb[0].mxu0
    %632 = vmatprep.mubr.f32.mxu0 0.0
    %633 = vmatmul.mubr.f32.gmra.mrb[0].mxu0 %v342
    %v634 = vpop.f32.mrb[0].mxu0
    %v635 = vadd.f32 %v550, %v634
    %v636 = vpop.f32.mrb[0].mxu0
    %637 = vmatprep.mubr.f32.mxu0 0.0
    %638 = vmatmul.mubr.f32.gmra.mrb[0].mxu0 %v347
    %v639 = vpop.f32.mrb[0].mxu0
    %v640 = vadd.f32 %v555, %v639
    %v641 = vpop.f32.mrb[0].mxu0
    %642 = vdwg.mxu0
    %s643 = scalar_lea.vmem %s3, 64
    %v644 = vld [vmem:[%s643] sm:$0xff]
    %v645 = vld [vmem:[%s643 + $0x8] sm:$0xff]
    %v646 = vld [vmem:[%s643 + $0x10] sm:$0xff]
    %v647 = vld [vmem:[%s643 + $0x18] sm:$0xff]
    %648 = vmatprep.subr.mxu0 0.0
    %649 = vmatpush1.msra.mxu0 %v245
    %650 = vmatprep.subr.mxu0 0.0
    %651 = vmatpush1.msra.mxu0 %v246
    %652 = vmatprep.subr.mxu0 0.0
    %653 = vmatpush1.msra.mxu0 %v247
    %654 = vmatprep.subr.mxu0 0.0
    %655 = vmatpush1.msra.mxu0 %v248
    %656 = vmatprep.subr.mxu0 0.0
    %657 = vmatpush1.msra.mxu0 %v249
    %658 = vmatprep.subr.mxu0 0.0
    %659 = vmatpush1.msra.mxu0 %v250
    %660 = vmatprep.subr.mxu0 0.0
    %661 = vmatpush1.msra.mxu0 %v251
    %662 = vmatprep.subr.mxu0 0.0
    %663 = vmatpush1.msra.mxu0 %v252
    %664 = vmatprep.subr.mxu0 0.0
    %665 = vmatpush1.msra.mxu0 %v253
    %666 = vmatprep.subr.mxu0 0.0
    %667 = vmatpush1.msra.mxu0 %v254
    %668 = vmatprep.subr.mxu0 0.0
    %669 = vmatpush1.msra.mxu0 %v255
    %670 = vmatprep.subr.mxu0 0.0
    %671 = vmatpush1.msra.mxu0 %v256
    %672 = vmatprep.subr.mxu0 0.0
    %673 = vmatpush1.msra.mxu0 %v257
    %674 = vmatprep.subr.mxu0 0.0
    %675 = vmatpush1.msra.mxu0 %v258
    %676 = vmatprep.subr.mxu0 0.0
    %677 = vmatpush1.msra.mxu0 %v259
    %678 = vmatprep.subr.mxu0 0.0
    %679 = vmatpush1.msra.mxu0 %v260
    %680 = vmatprep.subr.mxu0 0.0
    %681 = vmatpush1.msra.mxu0 0.0
    %682 = vmatprep.subr.mxu0 0.0
    %683 = vmatpush1.msra.mxu0 0.0
    %684 = vmatprep.subr.mxu0 0.0
    %685 = vmatpush1.msra.mxu0 0.0
    %686 = vmatprep.subr.mxu0 0.0
    %687 = vmatpush1.msra.mxu0 0.0
    %688 = vmatprep.subr.mxu0 0.0
    %689 = vmatpush1.msra.mxu0 0.0
    %690 = vmatprep.subr.mxu0 0.0
    %691 = vmatpush1.msra.mxu0 0.0
    %692 = vmatprep.subr.mxu0 0.0
    %693 = vmatpush1.msra.mxu0 0.0
    %694 = vmatprep.subr.mxu0 0.0
    %695 = vmatpush1.msra.mxu0 0.0
    %696 = vmatprep.subr.mxu0 0.0
    %697 = vmatpush1.msra.mxu0 0.0
    %698 = vmatprep.subr.mxu0 0.0
    %699 = vmatpush1.msra.mxu0 0.0
    %700 = vmatprep.subr.mxu0 0.0
    %701 = vmatpush1.msra.mxu0 0.0
    %702 = vmatprep.subr.mxu0 0.0
    %703 = vmatpush1.msra.mxu0 0.0
    %704 = vmatprep.subr.mxu0 0.0
    %705 = vmatpush1.msra.mxu0 0.0
    %706 = vmatprep.subr.mxu0 0.0
    %707 = vmatpush1.msra.mxu0 0.0
    %708 = vmatprep.subr.mxu0 0.0
    %709 = vmatpush1.msra.mxu0 0.0
    %710 = vmatprep.subr.mxu0 0.0
    %711 = vmatpush1.msra.mxu0 0.0
    %712 = vmatprep.mubr.f32.mxu0 0.0
    %713 = vmatmul.mubr.f32.gmra.mrb[0].mxu0 %v644
    %v714 = vpop.f32.mrb[0].mxu0
    %v715 = vadd.f32 0.0, %v714
    %v716 = vpop.f32.mrb[0].mxu0
    %717 = vmatprep.mubr.f32.mxu0 0.0
    %718 = vmatmul.mubr.f32.gmra.mrb[0].mxu0 %v645
    %v719 = vpop.f32.mrb[0].mxu0
    %v720 = vadd.f32 0.0, %v719
    %v721 = vpop.f32.mrb[0].mxu0
    %722 = vmatprep.mubr.f32.mxu0 0.0
    %723 = vmatmul.mubr.f32.gmra.mrb[0].mxu0 %v646
    %v724 = vpop.f32.mrb[0].mxu0
    %v725 = vadd.f32 0.0, %v724
    %v726 = vpop.f32.mrb[0].mxu0
    %727 = vmatprep.mubr.f32.mxu0 0.0
    %728 = vmatmul.mubr.f32.gmra.mrb[0].mxu0 %v647
    %v729 = vpop.f32.mrb[0].mxu0
    %v730 = vadd.f32 0.0, %v729
    %v731 = vpop.f32.mrb[0].mxu0
    %732 = vdwg.mxu0
    %s733 = scalar_lea.vmem %s4, 256
    %v734 = vld [vmem:[%s733] sm:$0xff]
    %v735 = vld [vmem:[%s733 + $0x8] sm:$0xff]
    %v736 = vld [vmem:[%s733 + $0x10] sm:$0xff]
    %v737 = vld [vmem:[%s733 + $0x18] sm:$0xff]
    %v738 = vld [vmem:[%s733 + $0x20] sm:$0xff]
    %v739 = vld [vmem:[%s733 + $0x28] sm:$0xff]
    %v740 = vld [vmem:[%s733 + $0x30] sm:$0xff]
    %v741 = vld [vmem:[%s733 + $0x38] sm:$0xff]
    %v742 = vld [vmem:[%s733 + $0x40] sm:$0xff]
    %v743 = vld [vmem:[%s733 + $0x48] sm:$0xff]
    %v744 = vld [vmem:[%s733 + $0x50] sm:$0xff]
    %v745 = vld [vmem:[%s733 + $0x58] sm:$0xff]
    %v746 = vld [vmem:[%s733 + $0x60] sm:$0xff]
    %v747 = vld [vmem:[%s733 + $0x68] sm:$0xff]
    %v748 = vld [vmem:[%s733 + $0x70] sm:$0xff]
    %v749 = vld [vmem:[%s733 + $0x78] sm:$0xff]
    %750 = vmatprep.subr.mxu0 0.0
    %751 = vmatpush1.msra.mxu0 %v734
    %752 = vmatprep.subr.mxu0 0.0
    %753 = vmatpush1.msra.mxu0 %v735
    %754 = vmatprep.subr.mxu0 0.0
    %755 = vmatpush1.msra.mxu0 %v736
    %756 = vmatprep.subr.mxu0 0.0
    %757 = vmatpush1.msra.mxu0 %v737
    %758 = vmatprep.subr.mxu0 0.0
    %759 = vmatpush1.msra.mxu0 %v738
    %760 = vmatprep.subr.mxu0 0.0
    %761 = vmatpush1.msra.mxu0 %v739
    %762 = vmatprep.subr.mxu0 0.0
    %763 = vmatpush1.msra.mxu0 %v740
    %764 = vmatprep.subr.mxu0 0.0
    %765 = vmatpush1.msra.mxu0 %v741
    %766 = vmatprep.subr.mxu0 0.0
    %767 = vmatpush1.msra.mxu0 %v742
    %768 = vmatprep.subr.mxu0 0.0
    %769 = vmatpush1.msra.mxu0 %v743
    %770 = vmatprep.subr.mxu0 0.0
    %771 = vmatpush1.msra.mxu0 %v744
    %772 = vmatprep.subr.mxu0 0.0
    %773 = vmatpush1.msra.mxu0 %v745
    %774 = vmatprep.subr.mxu0 0.0
    %775 = vmatpush1.msra.mxu0 %v746
    %776 = vmatprep.subr.mxu0 0.0
    %777 = vmatpush1.msra.mxu0 %v747
    %778 = vmatprep.subr.mxu0 0.0
    %779 = vmatpush1.msra.mxu0 %v748
    %780 = vmatprep.subr.mxu0 0.0
    %781 = vmatpush1.msra.mxu0 %v749
    %782 = vmatprep.subr.mxu0 0.0
    %783 = vmatpush1.msra.mxu0 0.0
    %784 = vmatprep.subr.mxu0 0.0
    %785 = vmatpush1.msra.mxu0 0.0
    %786 = vmatprep.subr.mxu0 0.0
    %787 = vmatpush1.msra.mxu0 0.0
    %788 = vmatprep.subr.mxu0 0.0
    %789 = vmatpush1.msra.mxu0 0.0
    %790 = vmatprep.subr.mxu0 0.0
    %791 = vmatpush1.msra.mxu0 0.0
    %792 = vmatprep.subr.mxu0 0.0
    %793 = vmatpush1.msra.mxu0 0.0
    %794 = vmatprep.subr.mxu0 0.0
    %795 = vmatpush1.msra.mxu0 0.0
    %796 = vmatprep.subr.mxu0 0.0
    %797 = vmatpush1.msra.mxu0 0.0
    %798 = vmatprep.subr.mxu0 0.0
    %799 = vmatpush1.msra.mxu0 0.0
    %800 = vmatprep.subr.mxu0 0.0
    %801 = vmatpush1.msra.mxu0 0.0
    %802 = vmatprep.subr.mxu0 0.0
    %803 = vmatpush1.msra.mxu0 0.0
    %804 = vmatprep.subr.mxu0 0.0
    %805 = vmatpush1.msra.mxu0 0.0
    %806 = vmatprep.subr.mxu0 0.0
    %807 = vmatpush1.msra.mxu0 0.0
    %808 = vmatprep.subr.mxu0 0.0
    %809 = vmatpush1.msra.mxu0 0.0
    %810 = vmatprep.subr.mxu0 0.0
    %811 = vmatpush1.msra.mxu0 0.0
    %812 = vmatprep.subr.mxu0 0.0
    %813 = vmatpush1.msra.mxu0 0.0
    %814 = vmatprep.mubr.f32.mxu0 0.0
    %815 = vmatmul.mubr.f32.gmra.mrb[0].mxu0 %v715
    %v816 = vpop.f32.mrb[0].mxu0
    %v817 = vadd.f32 0.0, %v816
    %v818 = vpop.f32.mrb[0].mxu0
    %819 = vmatprep.mubr.f32.mxu0 0.0
    %820 = vmatmul.mubr.f32.gmra.mrb[0].mxu0 %v720
    %v821 = vpop.f32.mrb[0].mxu0
    %v822 = vadd.f32 0.0, %v821
    %v823 = vpop.f32.mrb[0].mxu0
    %824 = vmatprep.mubr.f32.mxu0 0.0
    %825 = vmatmul.mubr.f32.gmra.mrb[0].mxu0 %v725
    %v826 = vpop.f32.mrb[0].mxu0
    %v827 = vadd.f32 0.0, %v826
    %v828 = vpop.f32.mrb[0].mxu0
    %829 = vmatprep.mubr.f32.mxu0 0.0
    %830 = vmatmul.mubr.f32.gmra.mrb[0].mxu0 %v730
    %v831 = vpop.f32.mrb[0].mxu0
    %v832 = vadd.f32 0.0, %v831
    %v833 = vpop.f32.mrb[0].mxu0
    %834 = vdwg.mxu0
    %v835 = vadd.f32 %v625, %v817
    %v836 = vadd.f32 %v630, %v822
    %v837 = vadd.f32 %v635, %v827
    %v838 = vadd.f32 %v640, %v832
    %s839 = scalar_lea.vmem %s3, 96
    %v840 = vld [vmem:[%s839] sm:$0xff]
    %v841 = vld [vmem:[%s839 + $0x8] sm:$0xff]
    %v842 = vld [vmem:[%s839 + $0x10] sm:$0xff]
    %v843 = vld [vmem:[%s839 + $0x18] sm:$0xff]
    %844 = vmatprep.subr.mxu0 0.0
    %845 = vmatpush1.msra.mxu0 %v245
    %846 = vmatprep.subr.mxu0 0.0
    %847 = vmatpush1.msra.mxu0 %v246
    %848 = vmatprep.subr.mxu0 0.0
    %849 = vmatpush1.msra.mxu0 %v247
    %850 = vmatprep.subr.mxu0 0.0
    %851 = vmatpush1.msra.mxu0 %v248
    %852 = vmatprep.subr.mxu0 0.0
    %853 = vmatpush1.msra.mxu0 %v249
    %854 = vmatprep.subr.mxu0 0.0
    %855 = vmatpush1.msra.mxu0 %v250
    %856 = vmatprep.subr.mxu0 0.0
    %857 = vmatpush1.msra.mxu0 %v251
    %858 = vmatprep.subr.mxu0 0.0
    %859 = vmatpush1.msra.mxu0 %v252
    %860 = vmatprep.subr.mxu0 0.0
    %861 = vmatpush1.msra.mxu0 %v253
    %862 = vmatprep.subr.mxu0 0.0
    %863 = vmatpush1.msra.mxu0 %v254
    %864 = vmatprep.subr.mxu0 0.0
    %865 = vmatpush1.msra.mxu0 %v255
    %866 = vmatprep.subr.mxu0 0.0
    %867 = vmatpush1.msra.mxu0 %v256
    %868 = vmatprep.subr.mxu0 0.0
    %869 = vmatpush1.msra.mxu0 %v257
    %870 = vmatprep.subr.mxu0 0.0
    %871 = vmatpush1.msra.mxu0 %v258
    %872 = vmatprep.subr.mxu0 0.0
    %873 = vmatpush1.msra.mxu0 %v259
    %874 = vmatprep.subr.mxu0 0.0
    %875 = vmatpush1.msra.mxu0 %v260
    %876 = vmatprep.subr.mxu0 0.0
    %877 = vmatpush1.msra.mxu0 0.0
    %878 = vmatprep.subr.mxu0 0.0
    %879 = vmatpush1.msra.mxu0 0.0
    %880 = vmatprep.subr.mxu0 0.0
    %881 = vmatpush1.msra.mxu0 0.0
    %882 = vmatprep.subr.mxu0 0.0
    %883 = vmatpush1.msra.mxu0 0.0
    %884 = vmatprep.subr.mxu0 0.0
    %885 = vmatpush1.msra.mxu0 0.0
    %886 = vmatprep.subr.mxu0 0.0
    %887 = vmatpush1.msra.mxu0 0.0
    %888 = vmatprep.subr.mxu0 0.0
    %889 = vmatpush1.msra.mxu0 0.0
    %890 = vmatprep.subr.mxu0 0.0
    %891 = vmatpush1.msra.mxu0 0.0
    %892 = vmatprep.subr.mxu0 0.0
    %893 = vmatpush1.msra.mxu0 0.0
    %894 = vmatprep.subr.mxu0 0.0
    %895 = vmatpush1.msra.mxu0 0.0
    %896 = vmatprep.subr.mxu0 0.0
    %897 = vmatpush1.msra.mxu0 0.0
    %898 = vmatprep.subr.mxu0 0.0
    %899 = vmatpush1.msra.mxu0 0.0
    %900 = vmatprep.subr.mxu0 0.0
    %901 = vmatpush1.msra.mxu0 0.0
    %902 = vmatprep.subr.mxu0 0.0
    %903 = vmatpush1.msra.mxu0 0.0
    %904 = vmatprep.subr.mxu0 0.0
    %905 = vmatpush1.msra.mxu0 0.0
    %906 = vmatprep.subr.mxu0 0.0
    %907 = vmatpush1.msra.mxu0 0.0
    %908 = vmatprep.mubr.f32.mxu0 0.0
    %909 = vmatmul.mubr.f32.gmra.mrb[0].mxu0 %v840
    %v910 = vpop.f32.mrb[0].mxu0
    %v911 = vadd.f32 0.0, %v910
    %v912 = vpop.f32.mrb[0].mxu0
    %913 = vmatprep.mubr.f32.mxu0 0.0
    %914 = vmatmul.mubr.f32.gmra.mrb[0].mxu0 %v841
    %v915 = vpop.f32.mrb[0].mxu0
    %v916 = vadd.f32 0.0, %v915
    %v917 = vpop.f32.mrb[0].mxu0
    %918 = vmatprep.mubr.f32.mxu0 0.0
    %919 = vmatmul.mubr.f32.gmra.mrb[0].mxu0 %v842
    %v920 = vpop.f32.mrb[0].mxu0
    %v921 = vadd.f32 0.0, %v920
    %v922 = vpop.f32.mrb[0].mxu0
    %923 = vmatprep.mubr.f32.mxu0 0.0
    %924 = vmatmul.mubr.f32.gmra.mrb[0].mxu0 %v843
    %v925 = vpop.f32.mrb[0].mxu0
    %v926 = vadd.f32 0.0, %v925
    %v927 = vpop.f32.mrb[0].mxu0
    %928 = vdwg.mxu0
    %s929 = scalar_lea.vmem %s4, 384
    %v930 = vld [vmem:[%s929] sm:$0xff]
    %v931 = vld [vmem:[%s929 + $0x8] sm:$0xff]
    %v932 = vld [vmem:[%s929 + $0x10] sm:$0xff]
    %v933 = vld [vmem:[%s929 + $0x18] sm:$0xff]
    %v934 = vld [vmem:[%s929 + $0x20] sm:$0xff]
    %v935 = vld [vmem:[%s929 + $0x28] sm:$0xff]
    %v936 = vld [vmem:[%s929 + $0x30] sm:$0xff]
    %v937 = vld [vmem:[%s929 + $0x38] sm:$0xff]
    %v938 = vld [vmem:[%s929 + $0x40] sm:$0xff]
    %v939 = vld [vmem:[%s929 + $0x48] sm:$0xff]
    %v940 = vld [vmem:[%s929 + $0x50] sm:$0xff]
    %v941 = vld [vmem:[%s929 + $0x58] sm:$0xff]
    %v942 = vld [vmem:[%s929 + $0x60] sm:$0xff]
    %v943 = vld [vmem:[%s929 + $0x68] sm:$0xff]
    %v944 = vld [vmem:[%s929 + $0x70] sm:$0xff]
    %v945 = vld [vmem:[%s929 + $0x78] sm:$0xff]
    %946 = vmatprep.subr.mxu0 0.0
    %947 = vmatpush1.msra.mxu0 %v930
    %948 = vmatprep.subr.mxu0 0.0
    %949 = vmatpush1.msra.mxu0 %v931
    %950 = vmatprep.subr.mxu0 0.0
    %951 = vmatpush1.msra.mxu0 %v932
    %952 = vmatprep.subr.mxu0 0.0
    %953 = vmatpush1.msra.mxu0 %v933
    %954 = vmatprep.subr.mxu0 0.0
    %955 = vmatpush1.msra.mxu0 %v934
    %956 = vmatprep.subr.mxu0 0.0
    %957 = vmatpush1.msra.mxu0 %v935
    %958 = vmatprep.subr.mxu0 0.0
    %959 = vmatpush1.msra.mxu0 %v936
    %960 = vmatprep.subr.mxu0 0.0
    %961 = vmatpush1.msra.mxu0 %v937
    %962 = vmatprep.subr.mxu0 0.0
    %963 = vmatpush1.msra.mxu0 %v938
    %964 = vmatprep.subr.mxu0 0.0
    %965 = vmatpush1.msra.mxu0 %v939
    %966 = vmatprep.subr.mxu0 0.0
    %967 = vmatpush1.msra.mxu0 %v940
    %968 = vmatprep.subr.mxu0 0.0
    %969 = vmatpush1.msra.mxu0 %v941
    %970 = vmatprep.subr.mxu0 0.0
    %971 = vmatpush1.msra.mxu0 %v942
    %972 = vmatprep.subr.mxu0 0.0
    %973 = vmatpush1.msra.mxu0 %v943
    %974 = vmatprep.subr.mxu0 0.0
    %975 = vmatpush1.msra.mxu0 %v944
    %976 = vmatprep.subr.mxu0 0.0
    %977 = vmatpush1.msra.mxu0 %v945
    %978 = vmatprep.subr.mxu0 0.0
    %979 = vmatpush1.msra.mxu0 0.0
    %980 = vmatprep.subr.mxu0 0.0
    %981 = vmatpush1.msra.mxu0 0.0
    %982 = vmatprep.subr.mxu0 0.0
    %983 = vmatpush1.msra.mxu0 0.0
    %984 = vmatprep.subr.mxu0 0.0
    %985 = vmatpush1.msra.mxu0 0.0
    %986 = vmatprep.subr.mxu0 0.0
    %987 = vmatpush1.msra.mxu0 0.0
    %988 = vmatprep.subr.mxu0 0.0
    %989 = vmatpush1.msra.mxu0 0.0
    %990 = vmatprep.subr.mxu0 0.0
    %991 = vmatpush1.msra.mxu0 0.0
    %992 = vmatprep.subr.mxu0 0.0
    %993 = vmatpush1.msra.mxu0 0.0
    %994 = vmatprep.subr.mxu0 0.0
    %995 = vmatpush1.msra.mxu0 0.0
    %996 = vmatprep.subr.mxu0 0.0
    %997 = vmatpush1.msra.mxu0 0.0
    %998 = vmatprep.subr.mxu0 0.0
    %999 = vmatpush1.msra.mxu0 0.0
    %1000 = vmatprep.subr.mxu0 0.0
    %1001 = vmatpush1.msra.mxu0 0.0
    %1002 = vmatprep.subr.mxu0 0.0
    %1003 = vmatpush1.msra.mxu0 0.0
    %1004 = vmatprep.subr.mxu0 0.0
    %1005 = vmatpush1.msra.mxu0 0.0
    %1006 = vmatprep.subr.mxu0 0.0
    %1007 = vmatpush1.msra.mxu0 0.0
    %1008 = vmatprep.subr.mxu0 0.0
    %1009 = vmatpush1.msra.mxu0 0.0
    %1010 = vmatprep.mubr.f32.mxu0 0.0
    %1011 = vmatmul.mubr.f32.gmra.mrb[0].mxu0 %v911
    %v1012 = vpop.f32.mrb[0].mxu0
    %v1013 = vadd.f32 0.0, %v1012
    %v1014 = vpop.f32.mrb[0].mxu0
    %1015 = vmatprep.mubr.f32.mxu0 0.0
    %1016 = vmatmul.mubr.f32.gmra.mrb[0].mxu0 %v916
    %v1017 = vpop.f32.mrb[0].mxu0
    %v1018 = vadd.f32 0.0, %v1017
    %v1019 = vpop.f32.mrb[0].mxu0
    %1020 = vmatprep.mubr.f32.mxu0 0.0
    %1021 = vmatmul.mubr.f32.gmra.mrb[0].mxu0 %v921
    %v1022 = vpop.f32.mrb[0].mxu0
    %v1023 = vadd.f32 0.0, %v1022
    %v1024 = vpop.f32.mrb[0].mxu0
    %1025 = vmatprep.mubr.f32.mxu0 0.0
    %1026 = vmatmul.mubr.f32.gmra.mrb[0].mxu0 %v926
    %v1027 = vpop.f32.mrb[0].mxu0
    %v1028 = vadd.f32 0.0, %v1027
    %v1029 = vpop.f32.mrb[0].mxu0
    %1030 = vdwg.mxu0
    %v1031 = vadd.f32 %v835, %v1013
    %v1032 = vadd.f32 %v836, %v1018
    %v1033 = vadd.f32 %v837, %v1023
    %v1034 = vadd.f32 %v838, %v1028
    %s1035 = scalar_lea.vmem %s3, 128
    %v1036 = vld [vmem:[%s1035] sm:$0xff]
    %v1037 = vld [vmem:[%s1035 + $0x8] sm:$0xff]
    %v1038 = vld [vmem:[%s1035 + $0x10] sm:$0xff]
    %v1039 = vld [vmem:[%s1035 + $0x18] sm:$0xff]
    %1040 = vmatprep.subr.mxu0 0.0
    %1041 = vmatpush1.msra.mxu0 %v245
    %1042 = vmatprep.subr.mxu0 0.0
    %1043 = vmatpush1.msra.mxu0 %v246
    %1044 = vmatprep.subr.mxu0 0.0
    %1045 = vmatpush1.msra.mxu0 %v247
    %1046 = vmatprep.subr.mxu0 0.0
    %1047 = vmatpush1.msra.mxu0 %v248
    %1048 = vmatprep.subr.mxu0 0.0
    %1049 = vmatpush1.msra.mxu0 %v249
    %1050 = vmatprep.subr.mxu0 0.0
    %1051 = vmatpush1.msra.mxu0 %v250
    %1052 = vmatprep.subr.mxu0 0.0
    %1053 = vmatpush1.msra.mxu0 %v251
    %1054 = vmatprep.subr.mxu0 0.0
    %1055 = vmatpush1.msra.mxu0 %v252
    %1056 = vmatprep.subr.mxu0 0.0
    %1057 = vmatpush1.msra.mxu0 %v253
    %1058 = vmatprep.subr.mxu0 0.0
    %1059 = vmatpush1.msra.mxu0 %v254
    %1060 = vmatprep.subr.mxu0 0.0
    %1061 = vmatpush1.msra.mxu0 %v255
    %1062 = vmatprep.subr.mxu0 0.0
    %1063 = vmatpush1.msra.mxu0 %v256
    %1064 = vmatprep.subr.mxu0 0.0
    %1065 = vmatpush1.msra.mxu0 %v257
    %1066 = vmatprep.subr.mxu0 0.0
    %1067 = vmatpush1.msra.mxu0 %v258
    %1068 = vmatprep.subr.mxu0 0.0
    %1069 = vmatpush1.msra.mxu0 %v259
    %1070 = vmatprep.subr.mxu0 0.0
    %1071 = vmatpush1.msra.mxu0 %v260
    %1072 = vmatprep.subr.mxu0 0.0
    %1073 = vmatpush1.msra.mxu0 0.0
    %1074 = vmatprep.subr.mxu0 0.0
    %1075 = vmatpush1.msra.mxu0 0.0
    %1076 = vmatprep.subr.mxu0 0.0
    %1077 = vmatpush1.msra.mxu0 0.0
    %1078 = vmatprep.subr.mxu0 0.0
    %1079 = vmatpush1.msra.mxu0 0.0
    %1080 = vmatprep.subr.mxu0 0.0
    %1081 = vmatpush1.msra.mxu0 0.0
    %1082 = vmatprep.subr.mxu0 0.0
    %1083 = vmatpush1.msra.mxu0 0.0
    %1084 = vmatprep.subr.mxu0 0.0
    %1085 = vmatpush1.msra.mxu0 0.0
    %1086 = vmatprep.subr.mxu0 0.0
    %1087 = vmatpush1.msra.mxu0 0.0
    %1088 = vmatprep.subr.mxu0 0.0
    %1089 = vmatpush1.msra.mxu0 0.0
    %1090 = vmatprep.subr.mxu0 0.0
    %1091 = vmatpush1.msra.mxu0 0.0
    %1092 = vmatprep.subr.mxu0 0.0
    %1093 = vmatpush1.msra.mxu0 0.0
    %1094 = vmatprep.subr.mxu0 0.0
    %1095 = vmatpush1.msra.mxu0 0.0
    %1096 = vmatprep.subr.mxu0 0.0
    %1097 = vmatpush1.msra.mxu0 0.0
    %1098 = vmatprep.subr.mxu0 0.0
    %1099 = vmatpush1.msra.mxu0 0.0
    %1100 = vmatprep.subr.mxu0 0.0
    %1101 = vmatpush1.msra.mxu0 0.0
    %1102 = vmatprep.subr.mxu0 0.0
    %1103 = vmatpush1.msra.mxu0 0.0
    %1104 = vmatprep.mubr.f32.mxu0 0.0
    %1105 = vmatmul.mubr.f32.gmra.mrb[0].mxu0 %v1036
    %v1106 = vpop.f32.mrb[0].mxu0
    %v1107 = vadd.f32 0.0, %v1106
    %v1108 = vpop.f32.mrb[0].mxu0
    %1109 = vmatprep.mubr.f32.mxu0 0.0
    %1110 = vmatmul.mubr.f32.gmra.mrb[0].mxu0 %v1037
    %v1111 = vpop.f32.mrb[0].mxu0
    %v1112 = vadd.f32 0.0, %v1111
    %v1113 = vpop.f32.mrb[0].mxu0
    %1114 = vmatprep.mubr.f32.mxu0 0.0
    %1115 = vmatmul.mubr.f32.gmra.mrb[0].mxu0 %v1038
    %v1116 = vpop.f32.mrb[0].mxu0
    %v1117 = vadd.f32 0.0, %v1116
    %v1118 = vpop.f32.mrb[0].mxu0
    %1119 = vmatprep.mubr.f32.mxu0 0.0
    %1120 = vmatmul.mubr.f32.gmra.mrb[0].mxu0 %v1039
    %v1121 = vpop.f32.mrb[0].mxu0
    %v1122 = vadd.f32 0.0, %v1121
    %v1123 = vpop.f32.mrb[0].mxu0
    %1124 = vdwg.mxu0
    %s1125 = scalar_lea.vmem %s4, 512
    %v1126 = vld [vmem:[%s1125] sm:$0xff]
    %v1127 = vld [vmem:[%s1125 + $0x8] sm:$0xff]
    %v1128 = vld [vmem:[%s1125 + $0x10] sm:$0xff]
    %v1129 = vld [vmem:[%s1125 + $0x18] sm:$0xff]
    %v1130 = vld [vmem:[%s1125 + $0x20] sm:$0xff]
    %v1131 = vld [vmem:[%s1125 + $0x28] sm:$0xff]
    %v1132 = vld [vmem:[%s1125 + $0x30] sm:$0xff]
    %v1133 = vld [vmem:[%s1125 + $0x38] sm:$0xff]
    %v1134 = vld [vmem:[%s1125 + $0x40] sm:$0xff]
    %v1135 = vld [vmem:[%s1125 + $0x48] sm:$0xff]
    %v1136 = vld [vmem:[%s1125 + $0x50] sm:$0xff]
    %v1137 = vld [vmem:[%s1125 + $0x58] sm:$0xff]
    %v1138 = vld [vmem:[%s1125 + $0x60] sm:$0xff]
    %v1139 = vld [vmem:[%s1125 + $0x68] sm:$0xff]
    %v1140 = vld [vmem:[%s1125 + $0x70] sm:$0xff]
    %v1141 = vld [vmem:[%s1125 + $0x78] sm:$0xff]
    %1142 = vmatprep.subr.mxu0 0.0
    %1143 = vmatpush1.msra.mxu0 %v1126
    %1144 = vmatprep.subr.mxu0 0.0
    %1145 = vmatpush1.msra.mxu0 %v1127
    %1146 = vmatprep.subr.mxu0 0.0
    %1147 = vmatpush1.msra.mxu0 %v1128
    %1148 = vmatprep.subr.mxu0 0.0
    %1149 = vmatpush1.msra.mxu0 %v1129
    %1150 = vmatprep.subr.mxu0 0.0
    %1151 = vmatpush1.msra.mxu0 %v1130
    %1152 = vmatprep.subr.mxu0 0.0
    %1153 = vmatpush1.msra.mxu0 %v1131
    %1154 = vmatprep.subr.mxu0 0.0
    %1155 = vmatpush1.msra.mxu0 %v1132
    %1156 = vmatprep.subr.mxu0 0.0
    %1157 = vmatpush1.msra.mxu0 %v1133
    %1158 = vmatprep.subr.mxu0 0.0
    %1159 = vmatpush1.msra.mxu0 %v1134
    %1160 = vmatprep.subr.mxu0 0.0
    %1161 = vmatpush1.msra.mxu0 %v1135
    %1162 = vmatprep.subr.mxu0 0.0
    %1163 = vmatpush1.msra.mxu0 %v1136
    %1164 = vmatprep.subr.mxu0 0.0
    %1165 = vmatpush1.msra.mxu0 %v1137
    %1166 = vmatprep.subr.mxu0 0.0
    %1167 = vmatpush1.msra.mxu0 %v1138
    %1168 = vmatprep.subr.mxu0 0.0
    %1169 = vmatpush1.msra.mxu0 %v1139
    %1170 = vmatprep.subr.mxu0 0.0
    %1171 = vmatpush1.msra.mxu0 %v1140
    %1172 = vmatprep.subr.mxu0 0.0
    %1173 = vmatpush1.msra.mxu0 %v1141
    %1174 = vmatprep.subr.mxu0 0.0
    %1175 = vmatpush1.msra.mxu0 0.0
    %1176 = vmatprep.subr.mxu0 0.0
    %1177 = vmatpush1.msra.mxu0 0.0
    %1178 = vmatprep.subr.mxu0 0.0
    %1179 = vmatpush1.msra.mxu0 0.0
    %1180 = vmatprep.subr.mxu0 0.0
    %1181 = vmatpush1.msra.mxu0 0.0
    %1182 = vmatprep.subr.mxu0 0.0
    %1183 = vmatpush1.msra.mxu0 0.0
    %1184 = vmatprep.subr.mxu0 0.0
    %1185 = vmatpush1.msra.mxu0 0.0
    %1186 = vmatprep.subr.mxu0 0.0
    %1187 = vmatpush1.msra.mxu0 0.0
    %1188 = vmatprep.subr.mxu0 0.0
    %1189 = vmatpush1.msra.mxu0 0.0
    %1190 = vmatprep.subr.mxu0 0.0
    %1191 = vmatpush1.msra.mxu0 0.0
    %1192 = vmatprep.subr.mxu0 0.0
    %1193 = vmatpush1.msra.mxu0 0.0
    %1194 = vmatprep.subr.mxu0 0.0
    %1195 = vmatpush1.msra.mxu0 0.0
    %1196 = vmatprep.subr.mxu0 0.0
    %1197 = vmatpush1.msra.mxu0 0.0
    %1198 = vmatprep.subr.mxu0 0.0
    %1199 = vmatpush1.msra.mxu0 0.0
    %1200 = vmatprep.subr.mxu0 0.0
    %1201 = vmatpush1.msra.mxu0 0.0
    %1202 = vmatprep.subr.mxu0 0.0
    %1203 = vmatpush1.msra.mxu0 0.0
    %1204 = vmatprep.subr.mxu0 0.0
    %1205 = vmatpush1.msra.mxu0 0.0
    %1206 = vmatprep.mubr.f32.mxu0 0.0
    %1207 = vmatmul.mubr.f32.gmra.mrb[0].mxu0 %v1107
    %v1208 = vpop.f32.mrb[0].mxu0
    %v1209 = vadd.f32 0.0, %v1208
    %v1210 = vpop.f32.mrb[0].mxu0
    %1211 = vmatprep.mubr.f32.mxu0 0.0
    %1212 = vmatmul.mubr.f32.gmra.mrb[0].mxu0 %v1112
    %v1213 = vpop.f32.mrb[0].mxu0
    %v1214 = vadd.f32 0.0, %v1213
    %v1215 = vpop.f32.mrb[0].mxu0
    %1216 = vmatprep.mubr.f32.mxu0 0.0
    %1217 = vmatmul.mubr.f32.gmra.mrb[0].mxu0 %v1117
    %v1218 = vpop.f32.mrb[0].mxu0
    %v1219 = vadd.f32 0.0, %v1218
    %v1220 = vpop.f32.mrb[0].mxu0
    %1221 = vmatprep.mubr.f32.mxu0 0.0
    %1222 = vmatmul.mubr.f32.gmra.mrb[0].mxu0 %v1122
    %v1223 = vpop.f32.mrb[0].mxu0
    %v1224 = vadd.f32 0.0, %v1223
    %v1225 = vpop.f32.mrb[0].mxu0
    %1226 = vdwg.mxu0
    %v1227 = vadd.f32 %v1031, %v1209
    %v1228 = vadd.f32 %v1032, %v1214
    %v1229 = vadd.f32 %v1033, %v1219
    %v1230 = vadd.f32 %v1034, %v1224
    %s1231 = scalar_lea.vmem %s3, 160
    %v1232 = vld [vmem:[%s1231] sm:$0xff]
    %v1233 = vld [vmem:[%s1231 + $0x8] sm:$0xff]
    %v1234 = vld [vmem:[%s1231 + $0x10] sm:$0xff]
    %v1235 = vld [vmem:[%s1231 + $0x18] sm:$0xff]
    %1236 = vmatprep.subr.mxu0 0.0
    %1237 = vmatpush1.msra.mxu0 %v245
    %1238 = vmatprep.subr.mxu0 0.0
    %1239 = vmatpush1.msra.mxu0 %v246
    %1240 = vmatprep.subr.mxu0 0.0
    %1241 = vmatpush1.msra.mxu0 %v247
    %1242 = vmatprep.subr.mxu0 0.0
    %1243 = vmatpush1.msra.mxu0 %v248
    %1244 = vmatprep.subr.mxu0 0.0
    %1245 = vmatpush1.msra.mxu0 %v249
    %1246 = vmatprep.subr.mxu0 0.0
    %1247 = vmatpush1.msra.mxu0 %v250
    %1248 = vmatprep.subr.mxu0 0.0
    %1249 = vmatpush1.msra.mxu0 %v251
    %1250 = vmatprep.subr.mxu0 0.0
    %1251 = vmatpush1.msra.mxu0 %v252
    %1252 = vmatprep.subr.mxu0 0.0
    %1253 = vmatpush1.msra.mxu0 %v253
    %1254 = vmatprep.subr.mxu0 0.0
    %1255 = vmatpush1.msra.mxu0 %v254
    %1256 = vmatprep.subr.mxu0 0.0
    %1257 = vmatpush1.msra.mxu0 %v255
    %1258 = vmatprep.subr.mxu0 0.0
    %1259 = vmatpush1.msra.mxu0 %v256
    %1260 = vmatprep.subr.mxu0 0.0
    %1261 = vmatpush1.msra.mxu0 %v257
    %1262 = vmatprep.subr.mxu0 0.0
    %1263 = vmatpush1.msra.mxu0 %v258
    %1264 = vmatprep.subr.mxu0 0.0
    %1265 = vmatpush1.msra.mxu0 %v259
    %1266 = vmatprep.subr.mxu0 0.0
    %1267 = vmatpush1.msra.mxu0 %v260
    %1268 = vmatprep.subr.mxu0 0.0
    %1269 = vmatpush1.msra.mxu0 0.0
    %1270 = vmatprep.subr.mxu0 0.0
    %1271 = vmatpush1.msra.mxu0 0.0
    %1272 = vmatprep.subr.mxu0 0.0
    %1273 = vmatpush1.msra.mxu0 0.0
    %1274 = vmatprep.subr.mxu0 0.0
    %1275 = vmatpush1.msra.mxu0 0.0
    %1276 = vmatprep.subr.mxu0 0.0
    %1277 = vmatpush1.msra.mxu0 0.0
    %1278 = vmatprep.subr.mxu0 0.0
    %1279 = vmatpush1.msra.mxu0 0.0
    %1280 = vmatprep.subr.mxu0 0.0
    %1281 = vmatpush1.msra.mxu0 0.0
    %1282 = vmatprep.subr.mxu0 0.0
    %1283 = vmatpush1.msra.mxu0 0.0
    %1284 = vmatprep.subr.mxu0 0.0
    %1285 = vmatpush1.msra.mxu0 0.0
    %1286 = vmatprep.subr.mxu0 0.0
    %1287 = vmatpush1.msra.mxu0 0.0
    %1288 = vmatprep.subr.mxu0 0.0
    %1289 = vmatpush1.msra.mxu0 0.0
    %1290 = vmatprep.subr.mxu0 0.0
    %1291 = vmatpush1.msra.mxu0 0.0
    %1292 = vmatprep.subr.mxu0 0.0
    %1293 = vmatpush1.msra.mxu0 0.0
    %1294 = vmatprep.subr.mxu0 0.0
    %1295 = vmatpush1.msra.mxu0 0.0
    %1296 = vmatprep.subr.mxu0 0.0
    %1297 = vmatpush1.msra.mxu0 0.0
    %1298 = vmatprep.subr.mxu0 0.0
    %1299 = vmatpush1.msra.mxu0 0.0
    %1300 = vmatprep.mubr.f32.mxu0 0.0
    %1301 = vmatmul.mubr.f32.gmra.mrb[0].mxu0 %v1232
    %v1302 = vpop.f32.mrb[0].mxu0
    %v1303 = vadd.f32 0.0, %v1302
    %v1304 = vpop.f32.mrb[0].mxu0
    %1305 = vmatprep.mubr.f32.mxu0 0.0
    %1306 = vmatmul.mubr.f32.gmra.mrb[0].mxu0 %v1233
    %v1307 = vpop.f32.mrb[0].mxu0
    %v1308 = vadd.f32 0.0, %v1307
    %v1309 = vpop.f32.mrb[0].mxu0
    %1310 = vmatprep.mubr.f32.mxu0 0.0
    %1311 = vmatmul.mubr.f32.gmra.mrb[0].mxu0 %v1234
    %v1312 = vpop.f32.mrb[0].mxu0
    %v1313 = vadd.f32 0.0, %v1312
    %v1314 = vpop.f32.mrb[0].mxu0
    %1315 = vmatprep.mubr.f32.mxu0 0.0
    %1316 = vmatmul.mubr.f32.gmra.mrb[0].mxu0 %v1235
    %v1317 = vpop.f32.mrb[0].mxu0
    %v1318 = vadd.f32 0.0, %v1317
    %v1319 = vpop.f32.mrb[0].mxu0
    %1320 = vdwg.mxu0
    %s1321 = scalar_lea.vmem %s4, 640
    %v1322 = vld [vmem:[%s1321] sm:$0xff]
    %v1323 = vld [vmem:[%s1321 + $0x8] sm:$0xff]
    %v1324 = vld [vmem:[%s1321 + $0x10] sm:$0xff]
    %v1325 = vld [vmem:[%s1321 + $0x18] sm:$0xff]
    %v1326 = vld [vmem:[%s1321 + $0x20] sm:$0xff]
    %v1327 = vld [vmem:[%s1321 + $0x28] sm:$0xff]
    %v1328 = vld [vmem:[%s1321 + $0x30] sm:$0xff]
    %v1329 = vld [vmem:[%s1321 + $0x38] sm:$0xff]
    %v1330 = vld [vmem:[%s1321 + $0x40] sm:$0xff]
    %v1331 = vld [vmem:[%s1321 + $0x48] sm:$0xff]
    %v1332 = vld [vmem:[%s1321 + $0x50] sm:$0xff]
    %v1333 = vld [vmem:[%s1321 + $0x58] sm:$0xff]
    %v1334 = vld [vmem:[%s1321 + $0x60] sm:$0xff]
    %v1335 = vld [vmem:[%s1321 + $0x68] sm:$0xff]
    %v1336 = vld [vmem:[%s1321 + $0x70] sm:$0xff]
    %v1337 = vld [vmem:[%s1321 + $0x78] sm:$0xff]
    %1338 = vmatprep.subr.mxu0 0.0
    %1339 = vmatpush1.msra.mxu0 %v1322
    %1340 = vmatprep.subr.mxu0 0.0
    %1341 = vmatpush1.msra.mxu0 %v1323
    %1342 = vmatprep.subr.mxu0 0.0
    %1343 = vmatpush1.msra.mxu0 %v1324
    %1344 = vmatprep.subr.mxu0 0.0
    %1345 = vmatpush1.msra.mxu0 %v1325
    %1346 = vmatprep.subr.mxu0 0.0
    %1347 = vmatpush1.msra.mxu0 %v1326
    %1348 = vmatprep.subr.mxu0 0.0
    %1349 = vmatpush1.msra.mxu0 %v1327
    %1350 = vmatprep.subr.mxu0 0.0
    %1351 = vmatpush1.msra.mxu0 %v1328
    %1352 = vmatprep.subr.mxu0 0.0
    %1353 = vmatpush1.msra.mxu0 %v1329
    %1354 = vmatprep.subr.mxu0 0.0
    %1355 = vmatpush1.msra.mxu0 %v1330
    %1356 = vmatprep.subr.mxu0 0.0
    %1357 = vmatpush1.msra.mxu0 %v1331
    %1358 = vmatprep.subr.mxu0 0.0
    %1359 = vmatpush1.msra.mxu0 %v1332
    %1360 = vmatprep.subr.mxu0 0.0
    %1361 = vmatpush1.msra.mxu0 %v1333
    %1362 = vmatprep.subr.mxu0 0.0
    %1363 = vmatpush1.msra.mxu0 %v1334
    %1364 = vmatprep.subr.mxu0 0.0
    %1365 = vmatpush1.msra.mxu0 %v1335
    %1366 = vmatprep.subr.mxu0 0.0
    %1367 = vmatpush1.msra.mxu0 %v1336
    %1368 = vmatprep.subr.mxu0 0.0
    %1369 = vmatpush1.msra.mxu0 %v1337
    %1370 = vmatprep.subr.mxu0 0.0
    %1371 = vmatpush1.msra.mxu0 0.0
    %1372 = vmatprep.subr.mxu0 0.0
    %1373 = vmatpush1.msra.mxu0 0.0
    %1374 = vmatprep.subr.mxu0 0.0
    %1375 = vmatpush1.msra.mxu0 0.0
    %1376 = vmatprep.subr.mxu0 0.0
    %1377 = vmatpush1.msra.mxu0 0.0
    %1378 = vmatprep.subr.mxu0 0.0
    %1379 = vmatpush1.msra.mxu0 0.0
    %1380 = vmatprep.subr.mxu0 0.0
    %1381 = vmatpush1.msra.mxu0 0.0
    %1382 = vmatprep.subr.mxu0 0.0
    %1383 = vmatpush1.msra.mxu0 0.0
    %1384 = vmatprep.subr.mxu0 0.0
    %1385 = vmatpush1.msra.mxu0 0.0
    %1386 = vmatprep.subr.mxu0 0.0
    %1387 = vmatpush1.msra.mxu0 0.0
    %1388 = vmatprep.subr.mxu0 0.0
    %1389 = vmatpush1.msra.mxu0 0.0
    %1390 = vmatprep.subr.mxu0 0.0
    %1391 = vmatpush1.msra.mxu0 0.0
    %1392 = vmatprep.subr.mxu0 0.0
    %1393 = vmatpush1.msra.mxu0 0.0
    %1394 = vmatprep.subr.mxu0 0.0
    %1395 = vmatpush1.msra.mxu0 0.0
    %1396 = vmatprep.subr.mxu0 0.0
    %1397 = vmatpush1.msra.mxu0 0.0
    %1398 = vmatprep.subr.mxu0 0.0
    %1399 = vmatpush1.msra.mxu0 0.0
    %1400 = vmatprep.subr.mxu0 0.0
    %1401 = vmatpush1.msra.mxu0 0.0
    %1402 = vmatprep.mubr.f32.mxu0 0.0
    %1403 = vmatmul.mubr.f32.gmra.mrb[0].mxu0 %v1303
    %v1404 = vpop.f32.mrb[0].mxu0
    %v1405 = vadd.f32 0.0, %v1404
    %v1406 = vpop.f32.mrb[0].mxu0
    %1407 = vmatprep.mubr.f32.mxu0 0.0
    %1408 = vmatmul.mubr.f32.gmra.mrb[0].mxu0 %v1308
    %v1409 = vpop.f32.mrb[0].mxu0
    %v1410 = vadd.f32 0.0, %v1409
    %v1411 = vpop.f32.mrb[0].mxu0
    %1412 = vmatprep.mubr.f32.mxu0 0.0
    %1413 = vmatmul.mubr.f32.gmra.mrb[0].mxu0 %v1313
    %v1414 = vpop.f32.mrb[0].mxu0
    %v1415 = vadd.f32 0.0, %v1414
    %v1416 = vpop.f32.mrb[0].mxu0
    %1417 = vmatprep.mubr.f32.mxu0 0.0
    %1418 = vmatmul.mubr.f32.gmra.mrb[0].mxu0 %v1318
    %v1419 = vpop.f32.mrb[0].mxu0
    %v1420 = vadd.f32 0.0, %v1419
    %v1421 = vpop.f32.mrb[0].mxu0
    %1422 = vdwg.mxu0
    %v1423 = vadd.f32 %v1227, %v1405
    %v1424 = vadd.f32 %v1228, %v1410
    %v1425 = vadd.f32 %v1229, %v1415
    %v1426 = vadd.f32 %v1230, %v1420
    %s1427 = scalar_lea.vmem %s3, 192
    %v1428 = vld [vmem:[%s1427] sm:$0xff]
    %v1429 = vld [vmem:[%s1427 + $0x8] sm:$0xff]
    %v1430 = vld [vmem:[%s1427 + $0x10] sm:$0xff]
    %v1431 = vld [vmem:[%s1427 + $0x18] sm:$0xff]
    %1432 = vmatprep.subr.mxu0 0.0
    %1433 = vmatpush1.msra.mxu0 %v245
    %1434 = vmatprep.subr.mxu0 0.0
    %1435 = vmatpush1.msra.mxu0 %v246
    %1436 = vmatprep.subr.mxu0 0.0
    %1437 = vmatpush1.msra.mxu0 %v247
    %1438 = vmatprep.subr.mxu0 0.0
    %1439 = vmatpush1.msra.mxu0 %v248
    %1440 = vmatprep.subr.mxu0 0.0
    %1441 = vmatpush1.msra.mxu0 %v249
    %1442 = vmatprep.subr.mxu0 0.0
    %1443 = vmatpush1.msra.mxu0 %v250
    %1444 = vmatprep.subr.mxu0 0.0
    %1445 = vmatpush1.msra.mxu0 %v251
    %1446 = vmatprep.subr.mxu0 0.0
    %1447 = vmatpush1.msra.mxu0 %v252
    %1448 = vmatprep.subr.mxu0 0.0
    %1449 = vmatpush1.msra.mxu0 %v253
    %1450 = vmatprep.subr.mxu0 0.0
    %1451 = vmatpush1.msra.mxu0 %v254
    %1452 = vmatprep.subr.mxu0 0.0
    %1453 = vmatpush1.msra.mxu0 %v255
    %1454 = vmatprep.subr.mxu0 0.0
    %1455 = vmatpush1.msra.mxu0 %v256
    %1456 = vmatprep.subr.mxu0 0.0
    %1457 = vmatpush1.msra.mxu0 %v257
    %1458 = vmatprep.subr.mxu0 0.0
    %1459 = vmatpush1.msra.mxu0 %v258
    %1460 = vmatprep.subr.mxu0 0.0
    %1461 = vmatpush1.msra.mxu0 %v259
    %1462 = vmatprep.subr.mxu0 0.0
    %1463 = vmatpush1.msra.mxu0 %v260
    %1464 = vmatprep.subr.mxu0 0.0
    %1465 = vmatpush1.msra.mxu0 0.0
    %1466 = vmatprep.subr.mxu0 0.0
    %1467 = vmatpush1.msra.mxu0 0.0
    %1468 = vmatprep.subr.mxu0 0.0
    %1469 = vmatpush1.msra.mxu0 0.0
    %1470 = vmatprep.subr.mxu0 0.0
    %1471 = vmatpush1.msra.mxu0 0.0
    %1472 = vmatprep.subr.mxu0 0.0
    %1473 = vmatpush1.msra.mxu0 0.0
    %1474 = vmatprep.subr.mxu0 0.0
    %1475 = vmatpush1.msra.mxu0 0.0
    %1476 = vmatprep.subr.mxu0 0.0
    %1477 = vmatpush1.msra.mxu0 0.0
    %1478 = vmatprep.subr.mxu0 0.0
    %1479 = vmatpush1.msra.mxu0 0.0
    %1480 = vmatprep.subr.mxu0 0.0
    %1481 = vmatpush1.msra.mxu0 0.0
    %1482 = vmatprep.subr.mxu0 0.0
    %1483 = vmatpush1.msra.mxu0 0.0
    %1484 = vmatprep.subr.mxu0 0.0
    %1485 = vmatpush1.msra.mxu0 0.0
    %1486 = vmatprep.subr.mxu0 0.0
    %1487 = vmatpush1.msra.mxu0 0.0
    %1488 = vmatprep.subr.mxu0 0.0
    %1489 = vmatpush1.msra.mxu0 0.0
    %1490 = vmatprep.subr.mxu0 0.0
    %1491 = vmatpush1.msra.mxu0 0.0
    %1492 = vmatprep.subr.mxu0 0.0
    %1493 = vmatpush1.msra.mxu0 0.0
    %1494 = vmatprep.subr.mxu0 0.0
    %1495 = vmatpush1.msra.mxu0 0.0
    %1496 = vmatprep.mubr.f32.mxu0 0.0
    %1497 = vmatmul.mubr.f32.gmra.mrb[0].mxu0 %v1428
    %v1498 = vpop.f32.mrb[0].mxu0
    %v1499 = vadd.f32 0.0, %v1498
    %v1500 = vpop.f32.mrb[0].mxu0
    %1501 = vmatprep.mubr.f32.mxu0 0.0
    %1502 = vmatmul.mubr.f32.gmra.mrb[0].mxu0 %v1429
    %v1503 = vpop.f32.mrb[0].mxu0
    %v1504 = vadd.f32 0.0, %v1503
    %v1505 = vpop.f32.mrb[0].mxu0
    %1506 = vmatprep.mubr.f32.mxu0 0.0
    %1507 = vmatmul.mubr.f32.gmra.mrb[0].mxu0 %v1430
    %v1508 = vpop.f32.mrb[0].mxu0
    %v1509 = vadd.f32 0.0, %v1508
    %v1510 = vpop.f32.mrb[0].mxu0
    %1511 = vmatprep.mubr.f32.mxu0 0.0
    %1512 = vmatmul.mubr.f32.gmra.mrb[0].mxu0 %v1431
    %v1513 = vpop.f32.mrb[0].mxu0
    %v1514 = vadd.f32 0.0, %v1513
    %v1515 = vpop.f32.mrb[0].mxu0
    %1516 = vdwg.mxu0
    %s1517 = scalar_lea.vmem %s4, 768
    %v1518 = vld [vmem:[%s1517] sm:$0xff]
    %v1519 = vld [vmem:[%s1517 + $0x8] sm:$0xff]
    %v1520 = vld [vmem:[%s1517 + $0x10] sm:$0xff]
    %v1521 = vld [vmem:[%s1517 + $0x18] sm:$0xff]
    %v1522 = vld [vmem:[%s1517 + $0x20] sm:$0xff]
    %v1523 = vld [vmem:[%s1517 + $0x28] sm:$0xff]
    %v1524 = vld [vmem:[%s1517 + $0x30] sm:$0xff]
    %v1525 = vld [vmem:[%s1517 + $0x38] sm:$0xff]
    %v1526 = vld [vmem:[%s1517 + $0x40] sm:$0xff]
    %v1527 = vld [vmem:[%s1517 + $0x48] sm:$0xff]
    %v1528 = vld [vmem:[%s1517 + $0x50] sm:$0xff]
    %v1529 = vld [vmem:[%s1517 + $0x58] sm:$0xff]
    %v1530 = vld [vmem:[%s1517 + $0x60] sm:$0xff]
    %v1531 = vld [vmem:[%s1517 + $0x68] sm:$0xff]
    %v1532 = vld [vmem:[%s1517 + $0x70] sm:$0xff]
    %v1533 = vld [vmem:[%s1517 + $0x78] sm:$0xff]
    %1534 = vmatprep.subr.mxu0 0.0
    %1535 = vmatpush1.msra.mxu0 %v1518
    %1536 = vmatprep.subr.mxu0 0.0
    %1537 = vmatpush1.msra.mxu0 %v1519
    %1538 = vmatprep.subr.mxu0 0.0
    %1539 = vmatpush1.msra.mxu0 %v1520
    %1540 = vmatprep.subr.mxu0 0.0
    %1541 = vmatpush1.msra.mxu0 %v1521
    %1542 = vmatprep.subr.mxu0 0.0
    %1543 = vmatpush1.msra.mxu0 %v1522
    %1544 = vmatprep.subr.mxu0 0.0
    %1545 = vmatpush1.msra.mxu0 %v1523
    %1546 = vmatprep.subr.mxu0 0.0
    %1547 = vmatpush1.msra.mxu0 %v1524
    %1548 = vmatprep.subr.mxu0 0.0
    %1549 = vmatpush1.msra.mxu0 %v1525
    %1550 = vmatprep.subr.mxu0 0.0
    %1551 = vmatpush1.msra.mxu0 %v1526
    %1552 = vmatprep.subr.mxu0 0.0
    %1553 = vmatpush1.msra.mxu0 %v1527
    %1554 = vmatprep.subr.mxu0 0.0
    %1555 = vmatpush1.msra.mxu0 %v1528
    %1556 = vmatprep.subr.mxu0 0.0
    %1557 = vmatpush1.msra.mxu0 %v1529
    %1558 = vmatprep.subr.mxu0 0.0
    %1559 = vmatpush1.msra.mxu0 %v1530
    %1560 = vmatprep.subr.mxu0 0.0
    %1561 = vmatpush1.msra.mxu0 %v1531
    %1562 = vmatprep.subr.mxu0 0.0
    %1563 = vmatpush1.msra.mxu0 %v1532
    %1564 = vmatprep.subr.mxu0 0.0
    %1565 = vmatpush1.msra.mxu0 %v1533
    %1566 = vmatprep.subr.mxu0 0.0
    %1567 = vmatpush1.msra.mxu0 0.0
    %1568 = vmatprep.subr.mxu0 0.0
    %1569 = vmatpush1.msra.mxu0 0.0
    %1570 = vmatprep.subr.mxu0 0.0
    %1571 = vmatpush1.msra.mxu0 0.0
    %1572 = vmatprep.subr.mxu0 0.0
    %1573 = vmatpush1.msra.mxu0 0.0
    %1574 = vmatprep.subr.mxu0 0.0
    %1575 = vmatpush1.msra.mxu0 0.0
    %1576 = vmatprep.subr.mxu0 0.0
    %1577 = vmatpush1.msra.mxu0 0.0
    %1578 = vmatprep.subr.mxu0 0.0
    %1579 = vmatpush1.msra.mxu0 0.0
    %1580 = vmatprep.subr.mxu0 0.0
    %1581 = vmatpush1.msra.mxu0 0.0
    %1582 = vmatprep.subr.mxu0 0.0
    %1583 = vmatpush1.msra.mxu0 0.0
    %1584 = vmatprep.subr.mxu0 0.0
    %1585 = vmatpush1.msra.mxu0 0.0
    %1586 = vmatprep.subr.mxu0 0.0
    %1587 = vmatpush1.msra.mxu0 0.0
    %1588 = vmatprep.subr.mxu0 0.0
    %1589 = vmatpush1.msra.mxu0 0.0
    %1590 = vmatprep.subr.mxu0 0.0
    %1591 = vmatpush1.msra.mxu0 0.0
    %1592 = vmatprep.subr.mxu0 0.0
    %1593 = vmatpush1.msra.mxu0 0.0
    %1594 = vmatprep.subr.mxu0 0.0
    %1595 = vmatpush1.msra.mxu0 0.0
    %1596 = vmatprep.subr.mxu0 0.0
    %1597 = vmatpush1.msra.mxu0 0.0
    %1598 = vmatprep.mubr.f32.mxu0 0.0
    %1599 = vmatmul.mubr.f32.gmra.mrb[0].mxu0 %v1499
    %v1600 = vpop.f32.mrb[0].mxu0
    %v1601 = vadd.f32 0.0, %v1600
    %v1602 = vpop.f32.mrb[0].mxu0
    %1603 = vmatprep.mubr.f32.mxu0 0.0
    %1604 = vmatmul.mubr.f32.gmra.mrb[0].mxu0 %v1504
    %v1605 = vpop.f32.mrb[0].mxu0
    %v1606 = vadd.f32 0.0, %v1605
    %v1607 = vpop.f32.mrb[0].mxu0
    %1608 = vmatprep.mubr.f32.mxu0 0.0
    %1609 = vmatmul.mubr.f32.gmra.mrb[0].mxu0 %v1509
    %v1610 = vpop.f32.mrb[0].mxu0
    %v1611 = vadd.f32 0.0, %v1610
    %v1612 = vpop.f32.mrb[0].mxu0
    %1613 = vmatprep.mubr.f32.mxu0 0.0
    %1614 = vmatmul.mubr.f32.gmra.mrb[0].mxu0 %v1514
    %v1615 = vpop.f32.mrb[0].mxu0
    %v1616 = vadd.f32 0.0, %v1615
    %v1617 = vpop.f32.mrb[0].mxu0
    %1618 = vdwg.mxu0
    %v1619 = vadd.f32 %v1423, %v1601
    %v1620 = vadd.f32 %v1424, %v1606
    %v1621 = vadd.f32 %v1425, %v1611
    %v1622 = vadd.f32 %v1426, %v1616
    %s1623 = scalar_lea.vmem %s3, 224
    %v1624 = vld [vmem:[%s1623] sm:$0xff]
    %v1625 = vld [vmem:[%s1623 + $0x8] sm:$0xff]
    %v1626 = vld [vmem:[%s1623 + $0x10] sm:$0xff]
    %v1627 = vld [vmem:[%s1623 + $0x18] sm:$0xff]
    %1628 = vmatprep.subr.mxu0 0.0
    %1629 = vmatpush1.msra.mxu0 %v245
    %1630 = vmatprep.subr.mxu0 0.0
    %1631 = vmatpush1.msra.mxu0 %v246
    %1632 = vmatprep.subr.mxu0 0.0
    %1633 = vmatpush1.msra.mxu0 %v247
    %1634 = vmatprep.subr.mxu0 0.0
    %1635 = vmatpush1.msra.mxu0 %v248
    %1636 = vmatprep.subr.mxu0 0.0
    %1637 = vmatpush1.msra.mxu0 %v249
    %1638 = vmatprep.subr.mxu0 0.0
    %1639 = vmatpush1.msra.mxu0 %v250
    %1640 = vmatprep.subr.mxu0 0.0
    %1641 = vmatpush1.msra.mxu0 %v251
    %1642 = vmatprep.subr.mxu0 0.0
    %1643 = vmatpush1.msra.mxu0 %v252
    %1644 = vmatprep.subr.mxu0 0.0
    %1645 = vmatpush1.msra.mxu0 %v253
    %1646 = vmatprep.subr.mxu0 0.0
    %1647 = vmatpush1.msra.mxu0 %v254
    %1648 = vmatprep.subr.mxu0 0.0
    %1649 = vmatpush1.msra.mxu0 %v255
    %1650 = vmatprep.subr.mxu0 0.0
    %1651 = vmatpush1.msra.mxu0 %v256
    %1652 = vmatprep.subr.mxu0 0.0
    %1653 = vmatpush1.msra.mxu0 %v257
    %1654 = vmatprep.subr.mxu0 0.0
    %1655 = vmatpush1.msra.mxu0 %v258
    %1656 = vmatprep.subr.mxu0 0.0
    %1657 = vmatpush1.msra.mxu0 %v259
    %1658 = vmatprep.subr.mxu0 0.0
    %1659 = vmatpush1.msra.mxu0 %v260
    %1660 = vmatprep.subr.mxu0 0.0
    %1661 = vmatpush1.msra.mxu0 0.0
    %1662 = vmatprep.subr.mxu0 0.0
    %1663 = vmatpush1.msra.mxu0 0.0
    %1664 = vmatprep.subr.mxu0 0.0
    %1665 = vmatpush1.msra.mxu0 0.0
    %1666 = vmatprep.subr.mxu0 0.0
    %1667 = vmatpush1.msra.mxu0 0.0
    %1668 = vmatprep.subr.mxu0 0.0
    %1669 = vmatpush1.msra.mxu0 0.0
    %1670 = vmatprep.subr.mxu0 0.0
    %1671 = vmatpush1.msra.mxu0 0.0
    %1672 = vmatprep.subr.mxu0 0.0
    %1673 = vmatpush1.msra.mxu0 0.0
    %1674 = vmatprep.subr.mxu0 0.0
    %1675 = vmatpush1.msra.mxu0 0.0
    %1676 = vmatprep.subr.mxu0 0.0
    %1677 = vmatpush1.msra.mxu0 0.0
    %1678 = vmatprep.subr.mxu0 0.0
    %1679 = vmatpush1.msra.mxu0 0.0
    %1680 = vmatprep.subr.mxu0 0.0
    %1681 = vmatpush1.msra.mxu0 0.0
    %1682 = vmatprep.subr.mxu0 0.0
    %1683 = vmatpush1.msra.mxu0 0.0
    %1684 = vmatprep.subr.mxu0 0.0
    %1685 = vmatpush1.msra.mxu0 0.0
    %1686 = vmatprep.subr.mxu0 0.0
    %1687 = vmatpush1.msra.mxu0 0.0
    %1688 = vmatprep.subr.mxu0 0.0
    %1689 = vmatpush1.msra.mxu0 0.0
    %1690 = vmatprep.subr.mxu0 0.0
    %1691 = vmatpush1.msra.mxu0 0.0
    %1692 = vmatprep.mubr.f32.mxu0 0.0
    %1693 = vmatmul.mubr.f32.gmra.mrb[0].mxu0 %v1624
    %v1694 = vpop.f32.mrb[0].mxu0
    %v1695 = vadd.f32 0.0, %v1694
    %v1696 = vpop.f32.mrb[0].mxu0
    %1697 = vmatprep.mubr.f32.mxu0 0.0
    %1698 = vmatmul.mubr.f32.gmra.mrb[0].mxu0 %v1625
    %v1699 = vpop.f32.mrb[0].mxu0
    %v1700 = vadd.f32 0.0, %v1699
    %v1701 = vpop.f32.mrb[0].mxu0
    %1702 = vmatprep.mubr.f32.mxu0 0.0
    %1703 = vmatmul.mubr.f32.gmra.mrb[0].mxu0 %v1626
    %v1704 = vpop.f32.mrb[0].mxu0
    %v1705 = vadd.f32 0.0, %v1704
    %v1706 = vpop.f32.mrb[0].mxu0
    %1707 = vmatprep.mubr.f32.mxu0 0.0
    %1708 = vmatmul.mubr.f32.gmra.mrb[0].mxu0 %v1627
    %v1709 = vpop.f32.mrb[0].mxu0
    %v1710 = vadd.f32 0.0, %v1709
    %v1711 = vpop.f32.mrb[0].mxu0
    %1712 = vdwg.mxu0
    %s1713 = scalar_lea.vmem %s4, 896
    %v1714 = vld [vmem:[%s1713] sm:$0xff]
    %v1715 = vld [vmem:[%s1713 + $0x8] sm:$0xff]
    %v1716 = vld [vmem:[%s1713 + $0x10] sm:$0xff]
    %v1717 = vld [vmem:[%s1713 + $0x18] sm:$0xff]
    %v1718 = vld [vmem:[%s1713 + $0x20] sm:$0xff]
    %v1719 = vld [vmem:[%s1713 + $0x28] sm:$0xff]
    %v1720 = vld [vmem:[%s1713 + $0x30] sm:$0xff]
    %v1721 = vld [vmem:[%s1713 + $0x38] sm:$0xff]
    %v1722 = vld [vmem:[%s1713 + $0x40] sm:$0xff]
    %v1723 = vld [vmem:[%s1713 + $0x48] sm:$0xff]
    %v1724 = vld [vmem:[%s1713 + $0x50] sm:$0xff]
    %v1725 = vld [vmem:[%s1713 + $0x58] sm:$0xff]
    %v1726 = vld [vmem:[%s1713 + $0x60] sm:$0xff]
    %v1727 = vld [vmem:[%s1713 + $0x68] sm:$0xff]
    %v1728 = vld [vmem:[%s1713 + $0x70] sm:$0xff]
    %v1729 = vld [vmem:[%s1713 + $0x78] sm:$0xff]
    %1730 = vmatprep.subr.mxu0 0.0
    %1731 = vmatpush1.msra.mxu0 %v1714
    %1732 = vmatprep.subr.mxu0 0.0
    %1733 = vmatpush1.msra.mxu0 %v1715
    %1734 = vmatprep.subr.mxu0 0.0
    %1735 = vmatpush1.msra.mxu0 %v1716
    %1736 = vmatprep.subr.mxu0 0.0
    %1737 = vmatpush1.msra.mxu0 %v1717
    %1738 = vmatprep.subr.mxu0 0.0
    %1739 = vmatpush1.msra.mxu0 %v1718
    %1740 = vmatprep.subr.mxu0 0.0
    %1741 = vmatpush1.msra.mxu0 %v1719
    %1742 = vmatprep.subr.mxu0 0.0
    %1743 = vmatpush1.msra.mxu0 %v1720
    %1744 = vmatprep.subr.mxu0 0.0
    %1745 = vmatpush1.msra.mxu0 %v1721
    %1746 = vmatprep.subr.mxu0 0.0
    %1747 = vmatpush1.msra.mxu0 %v1722
    %1748 = vmatprep.subr.mxu0 0.0
    %1749 = vmatpush1.msra.mxu0 %v1723
    %1750 = vmatprep.subr.mxu0 0.0
    %1751 = vmatpush1.msra.mxu0 %v1724
    %1752 = vmatprep.subr.mxu0 0.0
    %1753 = vmatpush1.msra.mxu0 %v1725
    %1754 = vmatprep.subr.mxu0 0.0
    %1755 = vmatpush1.msra.mxu0 %v1726
    %1756 = vmatprep.subr.mxu0 0.0
    %1757 = vmatpush1.msra.mxu0 %v1727
    %1758 = vmatprep.subr.mxu0 0.0
    %1759 = vmatpush1.msra.mxu0 %v1728
    %1760 = vmatprep.subr.mxu0 0.0
    %1761 = vmatpush1.msra.mxu0 %v1729
    %1762 = vmatprep.subr.mxu0 0.0
    %1763 = vmatpush1.msra.mxu0 0.0
    %1764 = vmatprep.subr.mxu0 0.0
    %1765 = vmatpush1.msra.mxu0 0.0
    %1766 = vmatprep.subr.mxu0 0.0
    %1767 = vmatpush1.msra.mxu0 0.0
    %1768 = vmatprep.subr.mxu0 0.0
    %1769 = vmatpush1.msra.mxu0 0.0
    %1770 = vmatprep.subr.mxu0 0.0
    %1771 = vmatpush1.msra.mxu0 0.0
    %1772 = vmatprep.subr.mxu0 0.0
    %1773 = vmatpush1.msra.mxu0 0.0
    %1774 = vmatprep.subr.mxu0 0.0
    %1775 = vmatpush1.msra.mxu0 0.0
    %1776 = vmatprep.subr.mxu0 0.0
    %1777 = vmatpush1.msra.mxu0 0.0
    %1778 = vmatprep.subr.mxu0 0.0
    %1779 = vmatpush1.msra.mxu0 0.0
    %1780 = vmatprep.subr.mxu0 0.0
    %1781 = vmatpush1.msra.mxu0 0.0
    %1782 = vmatprep.subr.mxu0 0.0
    %1783 = vmatpush1.msra.mxu0 0.0
    %1784 = vmatprep.subr.mxu0 0.0
    %1785 = vmatpush1.msra.mxu0 0.0
    %1786 = vmatprep.subr.mxu0 0.0
    %1787 = vmatpush1.msra.mxu0 0.0
    %1788 = vmatprep.subr.mxu0 0.0
    %1789 = vmatpush1.msra.mxu0 0.0
    %1790 = vmatprep.subr.mxu0 0.0
    %1791 = vmatpush1.msra.mxu0 0.0
    %1792 = vmatprep.subr.mxu0 0.0
    %1793 = vmatpush1.msra.mxu0 0.0
    %1794 = vmatprep.mubr.f32.mxu0 0.0
    %1795 = vmatmul.mubr.f32.gmra.mrb[0].mxu0 %v1695
    %v1796 = vpop.f32.mrb[0].mxu0
    %v1797 = vadd.f32 0.0, %v1796
    %v1798 = vpop.f32.mrb[0].mxu0
    %1799 = vmatprep.mubr.f32.mxu0 0.0
    %1800 = vmatmul.mubr.f32.gmra.mrb[0].mxu0 %v1700
    %v1801 = vpop.f32.mrb[0].mxu0
    %v1802 = vadd.f32 0.0, %v1801
    %v1803 = vpop.f32.mrb[0].mxu0
    %1804 = vmatprep.mubr.f32.mxu0 0.0
    %1805 = vmatmul.mubr.f32.gmra.mrb[0].mxu0 %v1705
    %v1806 = vpop.f32.mrb[0].mxu0
    %v1807 = vadd.f32 0.0, %v1806
    %v1808 = vpop.f32.mrb[0].mxu0
    %1809 = vmatprep.mubr.f32.mxu0 0.0
    %1810 = vmatmul.mubr.f32.gmra.mrb[0].mxu0 %v1710
    %v1811 = vpop.f32.mrb[0].mxu0
    %v1812 = vadd.f32 0.0, %v1811
    %v1813 = vpop.f32.mrb[0].mxu0
    %1814 = vdwg.mxu0
    %v1815 = vadd.f32 %v1619, %v1797
    %v1816 = vadd.f32 %v1620, %v1802
    %v1817 = vadd.f32 %v1621, %v1807
    %v1818 = vadd.f32 %v1622, %v1812
    %s1819 = scalar_lea.vmem %s3, 256
    %v1820 = vld [vmem:[%s1819] sm:$0xff]
    %v1821 = vld [vmem:[%s1819 + $0x8] sm:$0xff]
    %v1822 = vld [vmem:[%s1819 + $0x10] sm:$0xff]
    %v1823 = vld [vmem:[%s1819 + $0x18] sm:$0xff]
    %1824 = vmatprep.subr.mxu0 0.0
    %1825 = vmatpush1.msra.mxu0 %v245
    %1826 = vmatprep.subr.mxu0 0.0
    %1827 = vmatpush1.msra.mxu0 %v246
    %1828 = vmatprep.subr.mxu0 0.0
    %1829 = vmatpush1.msra.mxu0 %v247
    %1830 = vmatprep.subr.mxu0 0.0
    %1831 = vmatpush1.msra.mxu0 %v248
    %1832 = vmatprep.subr.mxu0 0.0
    %1833 = vmatpush1.msra.mxu0 %v249
    %1834 = vmatprep.subr.mxu0 0.0
    %1835 = vmatpush1.msra.mxu0 %v250
    %1836 = vmatprep.subr.mxu0 0.0
    %1837 = vmatpush1.msra.mxu0 %v251
    %1838 = vmatprep.subr.mxu0 0.0
    %1839 = vmatpush1.msra.mxu0 %v252
    %1840 = vmatprep.subr.mxu0 0.0
    %1841 = vmatpush1.msra.mxu0 %v253
    %1842 = vmatprep.subr.mxu0 0.0
    %1843 = vmatpush1.msra.mxu0 %v254
    %1844 = vmatprep.subr.mxu0 0.0
    %1845 = vmatpush1.msra.mxu0 %v255
    %1846 = vmatprep.subr.mxu0 0.0
    %1847 = vmatpush1.msra.mxu0 %v256
    %1848 = vmatprep.subr.mxu0 0.0
    %1849 = vmatpush1.msra.mxu0 %v257
    %1850 = vmatprep.subr.mxu0 0.0
    %1851 = vmatpush1.msra.mxu0 %v258
    %1852 = vmatprep.subr.mxu0 0.0
    %1853 = vmatpush1.msra.mxu0 %v259
    %1854 = vmatprep.subr.mxu0 0.0
    %1855 = vmatpush1.msra.mxu0 %v260
    %1856 = vmatprep.subr.mxu0 0.0
    %1857 = vmatpush1.msra.mxu0 0.0
    %1858 = vmatprep.subr.mxu0 0.0
    %1859 = vmatpush1.msra.mxu0 0.0
    %1860 = vmatprep.subr.mxu0 0.0
    %1861 = vmatpush1.msra.mxu0 0.0
    %1862 = vmatprep.subr.mxu0 0.0
    %1863 = vmatpush1.msra.mxu0 0.0
    %1864 = vmatprep.subr.mxu0 0.0
    %1865 = vmatpush1.msra.mxu0 0.0
    %1866 = vmatprep.subr.mxu0 0.0
    %1867 = vmatpush1.msra.mxu0 0.0
    %1868 = vmatprep.subr.mxu0 0.0
    %1869 = vmatpush1.msra.mxu0 0.0
    %1870 = vmatprep.subr.mxu0 0.0
    %1871 = vmatpush1.msra.mxu0 0.0
    %1872 = vmatprep.subr.mxu0 0.0
    %1873 = vmatpush1.msra.mxu0 0.0
    %1874 = vmatprep.subr.mxu0 0.0
    %1875 = vmatpush1.msra.mxu0 0.0
    %1876 = vmatprep.subr.mxu0 0.0
    %1877 = vmatpush1.msra.mxu0 0.0
    %1878 = vmatprep.subr.mxu0 0.0
    %1879 = vmatpush1.msra.mxu0 0.0
    %1880 = vmatprep.subr.mxu0 0.0
    %1881 = vmatpush1.msra.mxu0 0.0
    %1882 = vmatprep.subr.mxu0 0.0
    %1883 = vmatpush1.msra.mxu0 0.0
    %1884 = vmatprep.subr.mxu0 0.0
    %1885 = vmatpush1.msra.mxu0 0.0
    %1886 = vmatprep.subr.mxu0 0.0
    %1887 = vmatpush1.msra.mxu0 0.0
    %1888 = vmatprep.mubr.f32.mxu0 0.0
    %1889 = vmatmul.mubr.f32.gmra.mrb[0].mxu0 %v1820
    %v1890 = vpop.f32.mrb[0].mxu0
    %v1891 = vadd.f32 0.0, %v1890
    %v1892 = vpop.f32.mrb[0].mxu0
    %1893 = vmatprep.mubr.f32.mxu0 0.0
    %1894 = vmatmul.mubr.f32.gmra.mrb[0].mxu0 %v1821
    %v1895 = vpop.f32.mrb[0].mxu0
    %v1896 = vadd.f32 0.0, %v1895
    %v1897 = vpop.f32.mrb[0].mxu0
    %1898 = vmatprep.mubr.f32.mxu0 0.0
    %1899 = vmatmul.mubr.f32.gmra.mrb[0].mxu0 %v1822
    %v1900 = vpop.f32.mrb[0].mxu0
    %v1901 = vadd.f32 0.0, %v1900
    %v1902 = vpop.f32.mrb[0].mxu0
    %1903 = vmatprep.mubr.f32.mxu0 0.0
    %1904 = vmatmul.mubr.f32.gmra.mrb[0].mxu0 %v1823
    %v1905 = vpop.f32.mrb[0].mxu0
    %v1906 = vadd.f32 0.0, %v1905
    %v1907 = vpop.f32.mrb[0].mxu0
    %1908 = vdwg.mxu0
    %s1909 = scalar_lea.vmem %s4, 1024
    %v1910 = vld [vmem:[%s1909] sm:$0xff]
    %v1911 = vld [vmem:[%s1909 + $0x8] sm:$0xff]
    %v1912 = vld [vmem:[%s1909 + $0x10] sm:$0xff]
    %v1913 = vld [vmem:[%s1909 + $0x18] sm:$0xff]
    %v1914 = vld [vmem:[%s1909 + $0x20] sm:$0xff]
    %v1915 = vld [vmem:[%s1909 + $0x28] sm:$0xff]
    %v1916 = vld [vmem:[%s1909 + $0x30] sm:$0xff]
    %v1917 = vld [vmem:[%s1909 + $0x38] sm:$0xff]
    %v1918 = vld [vmem:[%s1909 + $0x40] sm:$0xff]
    %v1919 = vld [vmem:[%s1909 + $0x48] sm:$0xff]
    %v1920 = vld [vmem:[%s1909 + $0x50] sm:$0xff]
    %v1921 = vld [vmem:[%s1909 + $0x58] sm:$0xff]
    %v1922 = vld [vmem:[%s1909 + $0x60] sm:$0xff]
    %v1923 = vld [vmem:[%s1909 + $0x68] sm:$0xff]
    %v1924 = vld [vmem:[%s1909 + $0x70] sm:$0xff]
    %v1925 = vld [vmem:[%s1909 + $0x78] sm:$0xff]
    %1926 = vmatprep.subr.mxu0 0.0
    %1927 = vmatpush1.msra.mxu0 %v1910
    %1928 = vmatprep.subr.mxu0 0.0
    %1929 = vmatpush1.msra.mxu0 %v1911
    %1930 = vmatprep.subr.mxu0 0.0
    %1931 = vmatpush1.msra.mxu0 %v1912
    %1932 = vmatprep.subr.mxu0 0.0
    %1933 = vmatpush1.msra.mxu0 %v1913
    %1934 = vmatprep.subr.mxu0 0.0
    %1935 = vmatpush1.msra.mxu0 %v1914
    %1936 = vmatprep.subr.mxu0 0.0
    %1937 = vmatpush1.msra.mxu0 %v1915
    %1938 = vmatprep.subr.mxu0 0.0
    %1939 = vmatpush1.msra.mxu0 %v1916
    %1940 = vmatprep.subr.mxu0 0.0
    %1941 = vmatpush1.msra.mxu0 %v1917
    %1942 = vmatprep.subr.mxu0 0.0
    %1943 = vmatpush1.msra.mxu0 %v1918
    %1944 = vmatprep.subr.mxu0 0.0
    %1945 = vmatpush1.msra.mxu0 %v1919
    %1946 = vmatprep.subr.mxu0 0.0
    %1947 = vmatpush1.msra.mxu0 %v1920
    %1948 = vmatprep.subr.mxu0 0.0
    %1949 = vmatpush1.msra.mxu0 %v1921
    %1950 = vmatprep.subr.mxu0 0.0
    %1951 = vmatpush1.msra.mxu0 %v1922
    %1952 = vmatprep.subr.mxu0 0.0
    %1953 = vmatpush1.msra.mxu0 %v1923
    %1954 = vmatprep.subr.mxu0 0.0
    %1955 = vmatpush1.msra.mxu0 %v1924
    %1956 = vmatprep.subr.mxu0 0.0
    %1957 = vmatpush1.msra.mxu0 %v1925
    %1958 = vmatprep.subr.mxu0 0.0
    %1959 = vmatpush1.msra.mxu0 0.0
    %1960 = vmatprep.subr.mxu0 0.0
    %1961 = vmatpush1.msra.mxu0 0.0
    %1962 = vmatprep.subr.mxu0 0.0
    %1963 = vmatpush1.msra.mxu0 0.0
    %1964 = vmatprep.subr.mxu0 0.0
    %1965 = vmatpush1.msra.mxu0 0.0
    %1966 = vmatprep.subr.mxu0 0.0
    %1967 = vmatpush1.msra.mxu0 0.0
    %1968 = vmatprep.subr.mxu0 0.0
    %1969 = vmatpush1.msra.mxu0 0.0
    %1970 = vmatprep.subr.mxu0 0.0
    %1971 = vmatpush1.msra.mxu0 0.0
    %1972 = vmatprep.subr.mxu0 0.0
    %1973 = vmatpush1.msra.mxu0 0.0
    %1974 = vmatprep.subr.mxu0 0.0
    %1975 = vmatpush1.msra.mxu0 0.0
    %1976 = vmatprep.subr.mxu0 0.0
    %1977 = vmatpush1.msra.mxu0 0.0
    %1978 = vmatprep.subr.mxu0 0.0
    %1979 = vmatpush1.msra.mxu0 0.0
    %1980 = vmatprep.subr.mxu0 0.0
    %1981 = vmatpush1.msra.mxu0 0.0
    %1982 = vmatprep.subr.mxu0 0.0
    %1983 = vmatpush1.msra.mxu0 0.0
    %1984 = vmatprep.subr.mxu0 0.0
    %1985 = vmatpush1.msra.mxu0 0.0
    %1986 = vmatprep.subr.mxu0 0.0
    %1987 = vmatpush1.msra.mxu0 0.0
    %1988 = vmatprep.subr.mxu0 0.0
    %1989 = vmatpush1.msra.mxu0 0.0
    %1990 = vmatprep.mubr.f32.mxu0 0.0
    %1991 = vmatmul.mubr.f32.gmra.mrb[0].mxu0 %v1891
    %v1992 = vpop.f32.mrb[0].mxu0
    %v1993 = vadd.f32 0.0, %v1992
    %v1994 = vpop.f32.mrb[0].mxu0
    %1995 = vmatprep.mubr.f32.mxu0 0.0
    %1996 = vmatmul.mubr.f32.gmra.mrb[0].mxu0 %v1896
    %v1997 = vpop.f32.mrb[0].mxu0
    %v1998 = vadd.f32 0.0, %v1997
    %v1999 = vpop.f32.mrb[0].mxu0
    %2000 = vmatprep.mubr.f32.mxu0 0.0
    %2001 = vmatmul.mubr.f32.gmra.mrb[0].mxu0 %v1901
    %v2002 = vpop.f32.mrb[0].mxu0
    %v2003 = vadd.f32 0.0, %v2002
    %v2004 = vpop.f32.mrb[0].mxu0
    %2005 = vmatprep.mubr.f32.mxu0 0.0
    %2006 = vmatmul.mubr.f32.gmra.mrb[0].mxu0 %v1906
    %v2007 = vpop.f32.mrb[0].mxu0
    %v2008 = vadd.f32 0.0, %v2007
    %v2009 = vpop.f32.mrb[0].mxu0
    %2010 = vdwg.mxu0
    %v2011 = vadd.f32 %v1815, %v1993
    %v2012 = vadd.f32 %v1816, %v1998
    %v2013 = vadd.f32 %v1817, %v2003
    %v2014 = vadd.f32 %v1818, %v2008
    %v2015 = vld [vmem:[%s5] sm:$0x1]
    %v2017 = vlaneseq
    %v2018 = vshrl.u32 %v2017, 7
    %v2019 = vsub.s32 0, %v2018
    %v2020 = vrot.slane %v2015, %v2019
    %v2022 = vadd.f32 %v2011, %v2020
    %v2023 = vadd.f32 %v2012, %v2020
    %v2024 = vadd.f32 %v2013, %v2020
    %v2025 = vadd.f32 %v2014, %v2020
    %2026 = vst [vmem:[#allocation2] sm:$0xff] %v2022
    %2027 = vst [vmem:[#allocation2 + $0x8] sm:$0xff] %v2023
    %2028 = vst [vmem:[#allocation2 + $0x10] sm:$0xff] %v2024
    %2029 = vst [vmem:[#allocation2 + $0x18] sm:$0xff] %v2025
    // Predicated region
    $region26: #{model_tanh_forward.1} parent=1 // pred_check
      _
    $region27: #{model_tanh_forward.1} parent=1 // pred_check_branch
      %2031 = sbr.rel (0) target = $region29
    $region28: #{model_tanh_forward.1} parent=1 // pred_region
      %s2033 = ssub.s32 512, 512
      %2034 = vsyncadd [#allocation3], %s2033
      %s2035 = sshll.u32 [#allocation2], 4
      %s2036 = int_to_ptr.vmem [resolvable:$true] %s2035
      %2041 = dma.vmem_to_hbm [thread:$0]  %s2036, 512, %s6, [#allocation3], 128, 128, 8
    $region29: #{model_tanh_forward.1} parent=1 // pred_fallthru
      _
    // Predicated region
    $region30: #{model_tanh_forward.1} parent=1 // pred_check
      _
    $region31: #{model_tanh_forward.1} parent=1 // pred_check_branch
      %2043 = sbr.rel (0) target = $region33
    $region32: #{model_tanh_forward.1} parent=1 // pred_region
      %2044 = dma.done [#allocation3], 512
    $region33: #{model_tanh_forward.1} parent=1 // pred_fallthru
      _
    %2045 = vsyncpa [#allocation3], 1

</llo_original>
